<compile_context>
chip_gen: v6e
topology: v6e:2x2x1
jax: 0.10.0
libtpu: 0.0.40
codegen_flags: <defaults>
</compile_context>

<pallas_src>
import functools

import jax
import jax.numpy as jnp
from jax.experimental import pallas as pl
from jax.experimental.pallas import tpu as pltpu  # noqa: F401  (kept for TPU-specific tuning)

# Synthetic one-hot feature sizes (the module only needs their shapes).
ONE_HOT_0_ENCODING_SIZE = 8
ONE_HOT_1_ENCODING_SIZE = 8
_LANES = 128


# ----------------------------- shared math helpers -----------------------------------------

def _elu(x):
    # exp only sees the non-positive branch -> no spurious inf on the discarded side.
    return jnp.where(x > 0, x, jnp.exp(jnp.minimum(x, 0.0)) - 1.0)


def _unflatten_params(flat, n_layers):
    w0in_t, b0in, w1in_t, b1in = flat[:4]
    layer_flat = flat[4:4 + 6 * n_layers]
    layer_params = [tuple(layer_flat[6 * l:6 * l + 6]) for l in range(n_layers)]
    wl0_t, bl0, wl1_t, bl1, wl2_t, bl2 = flat[4 + 6 * n_layers:]
    return (w0in_t, b0in, w1in_t, b1in, layer_params, wl0_t, bl0, wl1_t, bl1, wl2_t, bl2)


# ----------------------------- pure-JAX reference (original, unoptimized math) -------------

def _conv_att_ref(x_src, x_tgt_rows, nbhd, w, a_src, a_tgt):
    f32 = jnp.float32
    s_src = jnp.dot(x_src, a_src, preferred_element_type=f32)        # (n_src, 1)
    s_tgt = jnp.dot(x_tgt_rows, a_tgt, preferred_element_type=f32)   # (n_tgt, 1)
    att = _elu(s_tgt + jnp.transpose(s_src))                         # (n_tgt, n_src)
    msg = jnp.dot(x_src, w, preferred_element_type=f32)              # (n_src, c_out)
    return jnp.dot(nbhd * att, msg, preferred_element_type=f32)      # (n_tgt, c_out)


def _nanmean0(y):
    isn = jnp.isnan(y)
    cnt = jnp.sum(jnp.where(isn, 0.0, 1.0), axis=0, keepdims=True)
    s = jnp.sum(jnp.where(isn, 0.0, y), axis=0, keepdims=True)
    m = s / cnt
    return jnp.where(jnp.isnan(m), 0.0, m)


def _ccxn_forward_ref(x0_in, x1_in, adj0, inc2t, params):
    """Original CCXNModel.forward math (all layers, nanmean readout). Returns (1, 1)."""
    f32 = jnp.float32
    (w0in_t, b0in, w1in_t, b1in, layer_params,
     wl0_t, bl0, wl1_t, bl1, wl2_t, bl2) = params
    n2 = inc2t.shape[0]

    x0 = jnp.dot(x0_in, w0in_t, preferred_element_type=f32) + b0in
    x1 = jnp.dot(x1_in, w1in_t, preferred_element_type=f32) + b1in

    x2 = None
    for (w00, a00s, a00t, w12, a12s, a12t) in layer_params:
        x0_new = jnp.maximum(_conv_att_ref(x0, x0, adj0, w00, a00s, a00t), 0.0)
        x2 = jnp.maximum(_conv_att_ref(x1, x1[:n2, :], inc2t, w12, a12s, a12t), 0.0)
        x0 = x0_new

    y0 = jnp.dot(x0, wl0_t, preferred_element_type=f32) + bl0
    y1 = jnp.dot(x1, wl1_t, preferred_element_type=f32) + bl1
    y2 = jnp.dot(x2, wl2_t, preferred_element_type=f32) + bl2
    return _nanmean0(y2) + _nanmean0(y1) + _nanmean0(y0)


# ----------------------------- slab packing (layout glue, outside kernel) ------------------

def _round_up(n, m):
    return ((n + m - 1) // m) * m


def _pack_blocks(blocks):
    """Pack named (r, c<=128) f32 blocks into one (R, 128) slab + {name: (off, r, c)}."""
    layout = {}
    off = 0
    for name, arr in blocks:
        r, c = arr.shape
        assert c <= _LANES, (name, arr.shape)
        layout[name] = (off, r, c)
        off = _round_up(off + r, 8)          # keep every block sublane-aligned
    total_rows = _round_up(max(off, 8), 8)
    slab = jnp.zeros((total_rows, _LANES), jnp.float32)
    for name, arr in blocks:
        o, r, c = layout[name]
        slab = slab.at[o:o + r, :c].set(arr.astype(jnp.float32))
    return slab, layout


def pack_params(flat_params, n_layers):
    """All parameters -> one lane-dense (R, 128) slab (one DMA).

    Fusions done here (pure layout, no compute semantics change):
      * per conv: [W | a_src | a_tgt] concatenated along columns -> one MXU push in-kernel
      * only the LAST layer's conv_1_to_2 weights are packed (earlier ones never reach output)
      * readout weights stored as rows and readout biases pre-summed (mean commutes with lin)
    """
    (w0in_t, b0in, w1in_t, b1in, layer_params,
     wl0_t, bl0, wl1_t, bl1, wl2_t, bl2) = _unflatten_params(flat_params, n_layers)

    blocks = [("w0in", w0in_t), ("b0in", b0in), ("w1in", w1in_t), ("b1in", b1in)]
    for l, (w00, a00s, a00t, _, _, _) in enumerate(layer_params):
        blocks.append((f"conv00_{l}", jnp.concatenate([w00, a00s, a00t], axis=1)))
    _, _, _, w12, a12s, a12t = layer_params[-1]
    blocks.append(("conv12", jnp.concatenate([w12, a12s, a12t], axis=1)))
    blocks.append(("wl0", jnp.transpose(wl0_t)))
    blocks.append(("wl1", jnp.transpose(wl1_t)))
    blocks.append(("wl2", jnp.transpose(wl2_t)))
    blocks.append(("bias", (bl0 + bl1 + bl2).reshape(1, 1)))
    return _pack_blocks(blocks)


def pack_inputs(x0_in, x1_in, adj0, inc2t):
    """All four batched inputs -> one lane-dense (R, 128) slab (one wide DMA).

    The batch axis is flattened into rows so the kernel can fold it into the MXU M dim.
    """
    B, n0, f0 = x0_in.shape
    _, n1, f1 = x1_in.shape
    _, n2, _ = inc2t.shape
    blocks = [
        ("x0", x0_in.reshape(B * n0, f0)),
        ("x1", x1_in.reshape(B * n1, f1)),
        ("adj", adj0.reshape(B * n0, n0)),
        ("inc", inc2t.reshape(B * n2, n1)),
    ]
    return _pack_blocks(blocks)


# ----------------------------- Pallas kernel -----------------------------------------------

def _ccxn_kernel(n_layers, dims, sizes, p_layout, in_layout,
                 in_ref, p_ref, out_ref):
    f32 = jnp.float32
    c0, c1, c2 = dims
    B, n0, n1, n2 = sizes

    def param(name):
        o, r, c = p_layout[name]
        return p_ref[o:o + r, :c]            # static slice of the packed param slab

    def inp(name):
        o, r, c = in_layout[name]
        return in_ref[o:o + r, :c]           # static slice of the packed input slab

    x0f = inp("x0")                          # (B*n0, F0)  -- batch folded into rows
    x1f = inp("x1")                          # (B*n1, F1)
    adj0 = inp("adj").reshape(B, n0, n0)     # (B, n0, n0)
    inc2t = inp("inc").reshape(B, n2, n1)    # (B, n2, n1)

    # lin_0_input / lin_1_input : single MXU push each for the whole batch.
    x0 = jnp.dot(x0f, param("w0in"), preferred_element_type=f32) + param("b0in")  # (B*n0, c0)
    x1 = jnp.dot(x1f, param("w1in"), preferred_element_type=f32) + param("b1in")  # (B*n1, c1)

    # n_layers of attention conv_0_to_0 (+ ReLU); one fused (B*n0)-row MXU push per layer.
    for l in range(n_layers):
        fused = jnp.dot(x0, param(f"conv00_{l}"), preferred_element_type=f32)  # (B*n0, c0+2)
        msg = fused[:, :c0].reshape(B, n0, c0)
        s_src = fused[:, c0:c0 + 1].reshape(B, n0, 1)
        s_tgt = fused[:, c0 + 1:c0 + 2].reshape(B, n0, 1)
        att = _elu(s_tgt + jnp.swapaxes(s_src, 1, 2))                           # (B, n0, n0)
        x0 = jnp.einsum('bts,bsc->btc', adj0 * att, msg,
                        preferred_element_type=f32)                             # (B, n0, c0)
        x0 = jnp.maximum(x0, 0.0).reshape(B * n0, c0)

    # conv_1_to_2: x1 is layer-invariant and x2 is overwritten every layer, so only the
    # final layer's weights reach the output -> compute it once (bit-identical result).
    fused = jnp.dot(x1, param("conv12"), preferred_element_type=f32)            # (B*n1, c2+2)
    msg = fused[:, :c2].reshape(B, n1, c2)
    s_src = fused[:, c2:c2 + 1].reshape(B, n1, 1)
    s_tgt = fused[:, c2 + 1:c2 + 2].reshape(B, n1, 1)[:, :n2, :]                # (B, n2, 1)
    att = _elu(s_tgt + jnp.swapaxes(s_src, 1, 2))                               # (B, n2, n1)
    x2 = jnp.maximum(jnp.einsum('bts,bsc->btc', inc2t * att, msg,
                                preferred_element_type=f32), 0.0)               # (B, n2, c2)

    # Readout: nanmean == mean (no NaNs producible) and mean commutes with the final Linear
    # layers -> per-graph row-means first, then tiny row dots against the packed weight rows.
    m0 = jnp.mean(x0.reshape(B, n0, c0), axis=1)                                # (B, c0)
    m1 = jnp.mean(x1.reshape(B, n1, c1), axis=1)                                # (B, c1)
    m2 = jnp.mean(x2, axis=1)                                                   # (B, c2)
    res = (jnp.sum(m0 * param("wl0"), axis=1, keepdims=True)
           + jnp.sum(m1 * param("wl1"), axis=1, keepdims=True)
           + jnp.sum(m2 * param("wl2"), axis=1, keepdims=True)
           + param("bias")[0:1, 0:1])                                           # (B, 1)

    # One lane-dense, sublane-padded (rows, 128) store: row b = graph b's scalar broadcast.
    rows = out_ref.shape[0]
    if rows > B:
        res = jnp.concatenate([res, jnp.zeros((rows - B, 1), f32)], axis=0)
    out_ref[...] = jnp.broadcast_to(res, (rows, _LANES))


# ----------------------------- wrapper ------------------------------------------------------

def ccxn_model_forward(x0_in, x1_in, adj0, inc2t, flat_params, n_layers=2):
    """Batched CCXN forward.

    The whole batch (B graphs padded to a common size) runs in ONE grid step; all inputs
    travel as a single packed lane-dense slab and all parameters as another.  Returns (B,).
    """
    assert n_layers >= 1, "CCXN readout needs x_2 from at least one layer"
    B, n0, f0 = x0_in.shape
    _, n1, f1 = x1_in.shape
    _, n2, _ = inc2t.shape
    assert n1 >= n2  # conv_1_to_2 target rows are x1[:n2]
    assert n0 % 8 == 0 and n1 % 8 == 0 and n2 % 8 == 0, "cell counts must be 8-padded"

    (w0in_t, _, w1in_t, _, layer_params, *_rest) = _unflatten_params(flat_params, n_layers)
    c0 = w0in_t.shape[1]
    c1 = w1in_t.shape[1]
    c2 = layer_params[0][3].shape[1]

    p_slab, p_layout = pack_params(flat_params, n_layers)
    in_slab, in_layout = pack_inputs(x0_in, x1_in, adj0, inc2t)

    b_pad = _round_up(B, 8)
    kernel = functools.partial(_ccxn_kernel, n_layers, (c0, c1, c2),
                               (B, n0, n1, n2), p_layout, in_layout)

    out = pl.pallas_call(
        kernel,
        out_shape=jax.ShapeDtypeStruct((b_pad, _LANES), jnp.float32),
        grid=(1,),
        in_specs=[
            pl.BlockSpec(in_slab.shape, lambda i: (0, 0)),   # packed inputs (one wide DMA)
            pl.BlockSpec(p_slab.shape, lambda i: (0, 0)),    # packed params (one wide DMA)
        ],
        out_specs=pl.BlockSpec((b_pad, _LANES), lambda i: (0, 0)),
    )(in_slab, p_slab)
    return out[:B, 0]


# ----------------------------- parameter init (glue) ---------------------------------------

def init_params(key, in_channels_0, in_channels_1, in_channels_2, n_layers=2, scale=0.1):
    """Deterministic synthetic params.  Linear weights are pre-transposed (W^T) and attention
    weights pre-split into source/target halves -- pure layout glue, done outside the kernel."""
    c0, c1, c2 = in_channels_0, in_channels_1, in_channels_2
    keys = iter(jax.random.split(key, 32))

    def lin(fan_in, fan_out):
        kw, kb = jax.random.split(next(keys))
        w_t = scale * jax.random.normal(kw, (fan_in, fan_out), jnp.float32)
        b = scale * jax.random.normal(kb, (1, fan_out), jnp.float32)
        return w_t, b

    flat = []
    flat += list(lin(ONE_HOT_0_ENCODING_SIZE, c0))   # lin_0_input
    flat += list(lin(ONE_HOT_1_ENCODING_SIZE, c1))   # lin_1_input
    for _ in range(n_layers):
        w00 = scale * jax.random.normal(next(keys), (c0, c0), jnp.float32)
        a00 = scale * jax.random.normal(next(keys), (2 * c0, 1), jnp.float32)
        w12 = scale * jax.random.normal(next(keys), (c1, c2), jnp.float32)
        a12 = scale * jax.random.normal(next(keys), (2 * c1, 1), jnp.float32)
        flat += [w00, a00[:c0, :], a00[c0:, :], w12, a12[:c1, :], a12[c1:, :]]
    flat += list(lin(c0, 1))                         # lin_0
    flat += list(lin(c1, 1))                         # lin_1
    flat += list(lin(c2, 1))                         # lin_2
    return flat


# ----------------------------- main ---------------------------------------------------------

if __name__ == "__main__":
    key = jax.random.PRNGKey(0)
    B = 4                           # number of cell complexes processed per pallas_call
    n0, n1, n2 = 16, 24, 8          # number of 0-, 1-, 2-cells (common padded size)
    c0, c1, c2 = 16, 16, 16         # in_channels_0/1/2
    n_layers = 2

    kx0, kx1, ka, ki, ks, kp = jax.random.split(key, 6)
    x0_in = jax.random.normal(kx0, (B, n0, ONE_HOT_0_ENCODING_SIZE), jnp.float32)
    x1_in = jax.random.normal(kx1, (B, n1, ONE_HOT_1_ENCODING_SIZE), jnp.float32)

    # adjacency_0: per-graph symmetric 0/1 matrix, zero diagonal (dense view of sparse op)
    a = (jax.random.uniform(ka, (B, n0, n0)) < 0.3).astype(jnp.float32)
    eye = jnp.eye(n0, dtype=jnp.float32)
    adj0 = jnp.clip(a + jnp.transpose(a, (0, 2, 1)), 0.0, 1.0) * (1.0 - eye)

    # incidence_2_t: (n2, n1) per graph with entries in {-1, 0, +1}
    mask = (jax.random.uniform(ki, (B, n2, n1)) < 0.25).astype(jnp.float32)
    sign = jnp.where(jax.random.uniform(ks, (B, n2, n1)) < 0.5, -1.0, 1.0)
    inc2t = mask * sign

    flat_params = init_params(kp, c0, c1, c2, n_layers=n_layers)

    out = ccxn_model_forward(x0_in, x1_in, adj0, inc2t, flat_params, n_layers=n_layers)
    out = jax.block_until_ready(out)

    # Pure-JAX reference of the ORIGINAL (unoptimized) math, per graph.
    params = _unflatten_params(flat_params, n_layers)
    ref = jnp.stack([
        _ccxn_forward_ref(x0_in[b], x1_in[b], adj0[b], inc2t[b], params).reshape(())
        for b in range(B)
    ])

    assert out.shape == (B,), out.shape
    assert bool(jnp.allclose(out, ref, atol=1e-3, rtol=1e-3)), (out, ref)
    print("KERNEL_OK")
</pallas_src>

<mosaic_0001>
module attributes {stable_mosaic.version = 11 : i64} {
  func.func @_ccxn_kernel(%arg0: i32, %arg1: memref<256x128xf32, #tpu.memory_space<vmem>>, %arg2: memref<112x128xf32, #tpu.memory_space<vmem>>, %arg3: memref<8x128xf32, #tpu.memory_space<vmem>>) attributes {dimension_semantics = [#tpu.dimension_semantics<arbitrary>], iteration_bounds = array<i64: 1>, scalar_prefetch = 0 : i64, scratch_operands = 0 : i64, tpu.core_type = #tpu.core_type<tc>, window_params = [{pipeline_mode = #tpu.pipeline_mode<synchronous>, transform_indices = @transform_0, window_bounds = array<i64: 256, 128>}, {pipeline_mode = #tpu.pipeline_mode<synchronous>, transform_indices = @transform_1, window_bounds = array<i64: 112, 128>}, {pipeline_mode = #tpu.pipeline_mode<synchronous>, transform_indices = @transform_2, window_bounds = array<i64: 8, 128>}]} {
    %c0 = arith.constant 0 : index
    %c0_0 = arith.constant 0 : index
    %0 = vector.load %arg1[%c0, %c0_0] : memref<256x128xf32, #tpu.memory_space<vmem>>, vector<64x8xf32>
    %c64 = arith.constant 64 : index
    %c0_1 = arith.constant 0 : index
    %1 = vector.load %arg1[%c64, %c0_1] : memref<256x128xf32, #tpu.memory_space<vmem>>, vector<96x8xf32>
    %c160 = arith.constant 160 : index
    %c0_2 = arith.constant 0 : index
    %2 = vector.load %arg1[%c160, %c0_2] : memref<256x128xf32, #tpu.memory_space<vmem>>, vector<64x16xf32>
    %3 = vector.shape_cast %2 : vector<64x16xf32> to vector<4x16x16xf32>
    %c224 = arith.constant 224 : index
    %c0_3 = arith.constant 0 : index
    %4 = vector.load %arg1[%c224, %c0_3] : memref<256x128xf32, #tpu.memory_space<vmem>>, vector<32x24xf32>
    %5 = vector.shape_cast %4 : vector<32x24xf32> to vector<4x8x24xf32>
    %c0_4 = arith.constant 0 : index
    %c0_5 = arith.constant 0 : index
    %6 = vector.load %arg2[%c0_4, %c0_5] : memref<112x128xf32, #tpu.memory_space<vmem>>, vector<8x16xf32>
    %cst = arith.constant dense<0.000000e+00> : vector<64x16xf32>
    %7 = tpu.matmul %0, %6, %cst {dimension_numbers = #tpu.dot_dimension_numbers<[1], [0], [0], [1], [0, 0, 1, 1], [], []>} : vector<64x8xf32>, vector<8x16xf32>, vector<64x16xf32> -> vector<64x16xf32>
    %c8 = arith.constant 8 : index
    %c0_6 = arith.constant 0 : index
    %8 = vector.load %arg2[%c8, %c0_6] : memref<112x128xf32, #tpu.memory_space<vmem>>, vector<1x16xf32>
    %9 = vector.broadcast %8 : vector<1x16xf32> to vector<64x16xf32>
    %10 = arith.addf %7, %9 : vector<64x16xf32>
    %c16 = arith.constant 16 : index
    %c0_7 = arith.constant 0 : index
    %11 = vector.load %arg2[%c16, %c0_7] : memref<112x128xf32, #tpu.memory_space<vmem>>, vector<8x16xf32>
    %cst_8 = arith.constant dense<0.000000e+00> : vector<96x16xf32>
    %12 = tpu.matmul %1, %11, %cst_8 {dimension_numbers = #tpu.dot_dimension_numbers<[1], [0], [0], [1], [0, 0, 1, 1], [], []>} : vector<96x8xf32>, vector<8x16xf32>, vector<96x16xf32> -> vector<96x16xf32>
    %c24 = arith.constant 24 : index
    %c0_9 = arith.constant 0 : index
    %13 = vector.load %arg2[%c24, %c0_9] : memref<112x128xf32, #tpu.memory_space<vmem>>, vector<1x16xf32>
    %14 = vector.broadcast %13 : vector<1x16xf32> to vector<96x16xf32>
    %15 = arith.addf %12, %14 : vector<96x16xf32>
    %c32 = arith.constant 32 : index
    %c0_10 = arith.constant 0 : index
    %16 = vector.load %arg2[%c32, %c0_10] : memref<112x128xf32, #tpu.memory_space<vmem>>, vector<16x18xf32>
    %cst_11 = arith.constant dense<0.000000e+00> : vector<64x18xf32>
    %17 = tpu.matmul %10, %16, %cst_11 {dimension_numbers = #tpu.dot_dimension_numbers<[1], [0], [0], [1], [0, 0, 1, 1], [], []>} : vector<64x16xf32>, vector<16x18xf32>, vector<64x18xf32> -> vector<64x18xf32>
    %18 = vector.extract_strided_slice %17 {offsets = [0, 0], sizes = [64, 16], strides = [1, 1]} : vector<64x18xf32> to vector<64x16xf32>
    %19 = vector.shape_cast %18 : vector<64x16xf32> to vector<4x16x16xf32>
    %20 = vector.extract_strided_slice %17 {offsets = [0, 16], sizes = [64, 1], strides = [1, 1]} : vector<64x18xf32> to vector<64x1xf32>
    %21 = vector.shape_cast %20 : vector<64x1xf32> to vector<4x16x1xf32>
    %22 = vector.extract_strided_slice %17 {offsets = [0, 17], sizes = [64, 1], strides = [1, 1]} : vector<64x18xf32> to vector<64x1xf32>
    %23 = vector.shape_cast %22 : vector<64x1xf32> to vector<4x16x1xf32>
    %24 = tpu.transpose %21, [0, 2, 1] : vector<4x16x1xf32> -> vector<4x1x16xf32>
    %25 = vector.broadcast %23 : vector<4x16x1xf32> to vector<4x16x16xf32>
    %26 = vector.broadcast %24 : vector<4x1x16xf32> to vector<4x16x16xf32>
    %27 = arith.addf %25, %26 : vector<4x16x16xf32>
    %cst_12 = arith.constant 0.000000e+00 : f32
    %28 = vector.broadcast %cst_12 : f32 to vector<4x16x16xf32>
    %29 = arith.cmpf ogt, %27, %28 : vector<4x16x16xf32>
    %cst_13 = arith.constant 0.000000e+00 : f32
    %30 = vector.broadcast %cst_13 : f32 to vector<4x16x16xf32>
    %31 = arith.minimumf %27, %30 : vector<4x16x16xf32>
    %32 = math.exp %31 : vector<4x16x16xf32>
    %cst_14 = arith.constant 1.000000e+00 : f32
    %33 = vector.broadcast %cst_14 : f32 to vector<4x16x16xf32>
    %34 = arith.subf %32, %33 : vector<4x16x16xf32>
    %35 = arith.select %29, %27, %34 : vector<4x16x16xi1>, vector<4x16x16xf32>
    %36 = arith.mulf %3, %35 : vector<4x16x16xf32>
    "tpu.trace_start"() <{level = 10 : i32, message = "bts,bsc->btc"}> : () -> ()
    %cst_15 = arith.constant dense<0.000000e+00> : vector<4x16x16xf32>
    %37 = tpu.matmul %36, %19, %cst_15 {dimension_numbers = #tpu.dot_dimension_numbers<[2], [1], [1], [2], [0, 0, 0, 1, 1, 2], [0], [0]>} : vector<4x16x16xf32>, vector<4x16x16xf32>, vector<4x16x16xf32> -> vector<4x16x16xf32>
    "tpu.trace_stop"() : () -> ()
    %cst_16 = arith.constant 0.000000e+00 : f32
    %38 = vector.broadcast %cst_16 : f32 to vector<4x16x16xf32>
    %39 = arith.maximumf %37, %38 : vector<4x16x16xf32>
    %40 = vector.shape_cast %39 : vector<4x16x16xf32> to vector<64x16xf32>
    %c48 = arith.constant 48 : index
    %c0_17 = arith.constant 0 : index
    %41 = vector.load %arg2[%c48, %c0_17] : memref<112x128xf32, #tpu.memory_space<vmem>>, vector<16x18xf32>
    %cst_18 = arith.constant dense<0.000000e+00> : vector<64x18xf32>
    %42 = tpu.matmul %40, %41, %cst_18 {dimension_numbers = #tpu.dot_dimension_numbers<[1], [0], [0], [1], [0, 0, 1, 1], [], []>} : vector<64x16xf32>, vector<16x18xf32>, vector<64x18xf32> -> vector<64x18xf32>
    %43 = vector.extract_strided_slice %42 {offsets = [0, 0], sizes = [64, 16], strides = [1, 1]} : vector<64x18xf32> to vector<64x16xf32>
    %44 = vector.shape_cast %43 : vector<64x16xf32> to vector<4x16x16xf32>
    %45 = vector.extract_strided_slice %42 {offsets = [0, 16], sizes = [64, 1], strides = [1, 1]} : vector<64x18xf32> to vector<64x1xf32>
    %46 = vector.shape_cast %45 : vector<64x1xf32> to vector<4x16x1xf32>
    %47 = vector.extract_strided_slice %42 {offsets = [0, 17], sizes = [64, 1], strides = [1, 1]} : vector<64x18xf32> to vector<64x1xf32>
    %48 = vector.shape_cast %47 : vector<64x1xf32> to vector<4x16x1xf32>
    %49 = tpu.transpose %46, [0, 2, 1] : vector<4x16x1xf32> -> vector<4x1x16xf32>
    %50 = vector.broadcast %48 : vector<4x16x1xf32> to vector<4x16x16xf32>
    %51 = vector.broadcast %49 : vector<4x1x16xf32> to vector<4x16x16xf32>
    %52 = arith.addf %50, %51 : vector<4x16x16xf32>
    %cst_19 = arith.constant 0.000000e+00 : f32
    %53 = vector.broadcast %cst_19 : f32 to vector<4x16x16xf32>
    %54 = arith.cmpf ogt, %52, %53 : vector<4x16x16xf32>
    %cst_20 = arith.constant 0.000000e+00 : f32
    %55 = vector.broadcast %cst_20 : f32 to vector<4x16x16xf32>
    %56 = arith.minimumf %52, %55 : vector<4x16x16xf32>
    %57 = math.exp %56 : vector<4x16x16xf32>
    %cst_21 = arith.constant 1.000000e+00 : f32
    %58 = vector.broadcast %cst_21 : f32 to vector<4x16x16xf32>
    %59 = arith.subf %57, %58 : vector<4x16x16xf32>
    %60 = arith.select %54, %52, %59 : vector<4x16x16xi1>, vector<4x16x16xf32>
    %61 = arith.mulf %3, %60 : vector<4x16x16xf32>
    "tpu.trace_start"() <{level = 10 : i32, message = "bts,bsc->btc"}> : () -> ()
    %cst_22 = arith.constant dense<0.000000e+00> : vector<4x16x16xf32>
    %62 = tpu.matmul %61, %44, %cst_22 {dimension_numbers = #tpu.dot_dimension_numbers<[2], [1], [1], [2], [0, 0, 0, 1, 1, 2], [0], [0]>} : vector<4x16x16xf32>, vector<4x16x16xf32>, vector<4x16x16xf32> -> vector<4x16x16xf32>
    "tpu.trace_stop"() : () -> ()
    %cst_23 = arith.constant 0.000000e+00 : f32
    %63 = vector.broadcast %cst_23 : f32 to vector<4x16x16xf32>
    %64 = arith.maximumf %62, %63 : vector<4x16x16xf32>
    %65 = vector.shape_cast %64 : vector<4x16x16xf32> to vector<64x16xf32>
    %c64_24 = arith.constant 64 : index
    %c0_25 = arith.constant 0 : index
    %66 = vector.load %arg2[%c64_24, %c0_25] : memref<112x128xf32, #tpu.memory_space<vmem>>, vector<16x18xf32>
    %cst_26 = arith.constant dense<0.000000e+00> : vector<96x18xf32>
    %67 = tpu.matmul %15, %66, %cst_26 {dimension_numbers = #tpu.dot_dimension_numbers<[1], [0], [0], [1], [0, 0, 1, 1], [], []>} : vector<96x16xf32>, vector<16x18xf32>, vector<96x18xf32> -> vector<96x18xf32>
    %68 = vector.extract_strided_slice %67 {offsets = [0, 0], sizes = [96, 16], strides = [1, 1]} : vector<96x18xf32> to vector<96x16xf32>
    %69 = vector.shape_cast %68 : vector<96x16xf32> to vector<4x24x16xf32>
    %70 = vector.extract_strided_slice %67 {offsets = [0, 16], sizes = [96, 1], strides = [1, 1]} : vector<96x18xf32> to vector<96x1xf32>
    %71 = vector.shape_cast %70 : vector<96x1xf32> to vector<4x24x1xf32>
    %72 = vector.extract_strided_slice %67 {offsets = [0, 17], sizes = [96, 1], strides = [1, 1]} : vector<96x18xf32> to vector<96x1xf32>
    %73 = vector.shape_cast %72 : vector<96x1xf32> to vector<4x24x1xf32>
    %74 = vector.extract_strided_slice %73 {offsets = [0, 0, 0], sizes = [4, 8, 1], strides = [1, 1, 1]} : vector<4x24x1xf32> to vector<4x8x1xf32>
    %75 = tpu.transpose %71, [0, 2, 1] : vector<4x24x1xf32> -> vector<4x1x24xf32>
    %76 = vector.broadcast %74 : vector<4x8x1xf32> to vector<4x8x24xf32>
    %77 = vector.broadcast %75 : vector<4x1x24xf32> to vector<4x8x24xf32>
    %78 = arith.addf %76, %77 : vector<4x8x24xf32>
    %cst_27 = arith.constant 0.000000e+00 : f32
    %79 = vector.broadcast %cst_27 : f32 to vector<4x8x24xf32>
    %80 = arith.cmpf ogt, %78, %79 : vector<4x8x24xf32>
    %cst_28 = arith.constant 0.000000e+00 : f32
    %81 = vector.broadcast %cst_28 : f32 to vector<4x8x24xf32>
    %82 = arith.minimumf %78, %81 : vector<4x8x24xf32>
    %83 = math.exp %82 : vector<4x8x24xf32>
    %cst_29 = arith.constant 1.000000e+00 : f32
    %84 = vector.broadcast %cst_29 : f32 to vector<4x8x24xf32>
    %85 = arith.subf %83, %84 : vector<4x8x24xf32>
    %86 = arith.select %80, %78, %85 : vector<4x8x24xi1>, vector<4x8x24xf32>
    %87 = arith.mulf %5, %86 : vector<4x8x24xf32>
    "tpu.trace_start"() <{level = 10 : i32, message = "bts,bsc->btc"}> : () -> ()
    %cst_30 = arith.constant dense<0.000000e+00> : vector<4x8x16xf32>
    %88 = tpu.matmul %87, %69, %cst_30 {dimension_numbers = #tpu.dot_dimension_numbers<[2], [1], [1], [2], [0, 0, 0, 1, 1, 2], [0], [0]>} : vector<4x8x24xf32>, vector<4x24x16xf32>, vector<4x8x16xf32> -> vector<4x8x16xf32>
    "tpu.trace_stop"() : () -> ()
    %cst_31 = arith.constant 0.000000e+00 : f32
    %89 = vector.broadcast %cst_31 : f32 to vector<4x8x16xf32>
    %90 = arith.maximumf %88, %89 : vector<4x8x16xf32>
    %91 = vector.shape_cast %65 : vector<64x16xf32> to vector<4x16x16xf32>
    %cst_32 = arith.constant dense<0.000000e+00> : vector<4x16xf32>
    %92 = vector.multi_reduction <add>, %91, %cst_32 [1] : vector<4x16x16xf32> to vector<4x16xf32>
    %cst_33 = arith.constant 1.600000e+01 : f32
    %93 = vector.broadcast %cst_33 : f32 to vector<4x16xf32>
    %94 = arith.divf %92, %93 : vector<4x16xf32>
    %95 = vector.shape_cast %15 : vector<96x16xf32> to vector<4x24x16xf32>
    %cst_34 = arith.constant dense<0.000000e+00> : vector<4x16xf32>
    %96 = vector.multi_reduction <add>, %95, %cst_34 [1] : vector<4x24x16xf32> to vector<4x16xf32>
    %cst_35 = arith.constant 2.400000e+01 : f32
    %97 = vector.broadcast %cst_35 : f32 to vector<4x16xf32>
    %98 = arith.divf %96, %97 : vector<4x16xf32>
    %cst_36 = arith.constant dense<0.000000e+00> : vector<4x16xf32>
    %99 = vector.multi_reduction <add>, %90, %cst_36 [1] : vector<4x8x16xf32> to vector<4x16xf32>
    %cst_37 = arith.constant 8.000000e+00 : f32
    %100 = vector.broadcast %cst_37 : f32 to vector<4x16xf32>
    %101 = arith.divf %99, %100 : vector<4x16xf32>
    %c80 = arith.constant 80 : index
    %c0_38 = arith.constant 0 : index
    %102 = vector.load %arg2[%c80, %c0_38] : memref<112x128xf32, #tpu.memory_space<vmem>>, vector<1x16xf32>
    %103 = vector.broadcast %102 : vector<1x16xf32> to vector<4x16xf32>
    %104 = arith.mulf %94, %103 : vector<4x16xf32>
    %cst_39 = arith.constant dense<0.000000e+00> : vector<4xf32>
    %105 = vector.multi_reduction <add>, %104, %cst_39 [1] : vector<4x16xf32> to vector<4xf32>
    %106 = vector.shape_cast %105 : vector<4xf32> to vector<4x1xf32>
    %c88 = arith.constant 88 : index
    %c0_40 = arith.constant 0 : index
    %107 = vector.load %arg2[%c88, %c0_40] : memref<112x128xf32, #tpu.memory_space<vmem>>, vector<1x16xf32>
    %108 = vector.broadcast %107 : vector<1x16xf32> to vector<4x16xf32>
    %109 = arith.mulf %98, %108 : vector<4x16xf32>
    %cst_41 = arith.constant dense<0.000000e+00> : vector<4xf32>
    %110 = vector.multi_reduction <add>, %109, %cst_41 [1] : vector<4x16xf32> to vector<4xf32>
    %111 = vector.shape_cast %110 : vector<4xf32> to vector<4x1xf32>
    %112 = arith.addf %106, %111 : vector<4x1xf32>
    %c96 = arith.constant 96 : index
    %c0_42 = arith.constant 0 : index
    %113 = vector.load %arg2[%c96, %c0_42] : memref<112x128xf32, #tpu.memory_space<vmem>>, vector<1x16xf32>
    %114 = vector.broadcast %113 : vector<1x16xf32> to vector<4x16xf32>
    %115 = arith.mulf %101, %114 : vector<4x16xf32>
    %cst_43 = arith.constant dense<0.000000e+00> : vector<4xf32>
    %116 = vector.multi_reduction <add>, %115, %cst_43 [1] : vector<4x16xf32> to vector<4xf32>
    %117 = vector.shape_cast %116 : vector<4xf32> to vector<4x1xf32>
    %118 = arith.addf %112, %117 : vector<4x1xf32>
    %c104 = arith.constant 104 : index
    %c0_44 = arith.constant 0 : index
    %119 = vector.load %arg2[%c104, %c0_44] : memref<112x128xf32, #tpu.memory_space<vmem>>, vector<1x1xf32>
    %120 = vector.broadcast %119 : vector<1x1xf32> to vector<4x1xf32>
    %121 = arith.addf %118, %120 : vector<4x1xf32>
    %cst_45 = arith.constant 0.000000e+00 : f32
    %122 = vector.broadcast %cst_45 : f32 to vector<4x1xf32>
    %123 = tpu.concatenate %121, %122 in 0 : vector<4x1xf32>, vector<4x1xf32> -> vector<8x1xf32>
    %124 = vector.shape_cast %123 : vector<8x1xf32> to vector<8x1xf32>
    %125 = vector.broadcast %124 : vector<8x1xf32> to vector<8x128xf32>
    %c0_46 = arith.constant 0 : index
    %c0_47 = arith.constant 0 : index
    %126 = vector.load %arg3[%c0_46, %c0_47] : memref<8x128xf32, #tpu.memory_space<vmem>>, vector<8x128xf32>
    tpu.vector_store %arg3[%c0_46, %c0_47], %125 {strides = array<i32>} : memref<8x128xf32, #tpu.memory_space<vmem>>, vector<8x128xf32>,
    return
  }
  func.func @transform_0(%arg0: i32) -> (i32, i32) {
    %c0_i32 = arith.constant 0 : i32
    %c0_i32_0 = arith.constant 0 : i32
    %c0_i32_1 = arith.constant 0 : i32
    return %c0_i32, %c0_i32_0 : i32, i32
  }
  func.func @transform_1(%arg0: i32) -> (i32, i32) {
    %c0_i32 = arith.constant 0 : i32
    %c0_i32_0 = arith.constant 0 : i32
    %c0_i32_1 = arith.constant 0 : i32
    return %c0_i32, %c0_i32_0 : i32, i32
  }
  func.func @transform_2(%arg0: i32) -> (i32, i32) {
    %c0_i32 = arith.constant 0 : i32
    %c0_i32_0 = arith.constant 0 : i32
    %c0_i32_1 = arith.constant 0 : i32
    return %c0_i32, %c0_i32_0 : i32, i32
  }
}

</mosaic_0001>

<llo_original>
// kernel: tpu_custom_call.1
$region0: #{tpu_custom_call.1}
  #allocation0 [shape = 'u32[]', space=smem, size = 0x4, offset = 0x4, fixed_abs, tag = 'smem constant byte address 0x4 - core index']
  #allocation1 [shape = 'u32[144,128]{1,0:T(1,128)}', space=vmem, size = 0x12000, scoped, tag = 'internal scratch']
  %s0 = inlined_call_operand.hbm [shape: f32[256,128], index: 0, kind: input, shape index: {}]
  %s1 = inlined_call_operand.hbm [shape: f32[112,128], index: 1, kind: input, shape index: {}]
  %s2 = inlined_call_operand.hbm [shape: f32[8,128], index: 2, kind: output, shape index: {}]
  %s3 = sld [smem:[#allocation0]]
  $region26: #{tpu_custom_call.1} parent=0
    _
  %s5 = ssub.s32 1, %s3
  %s6 = scalar_select 0, %s5, %s3
  $region1: #{tpu_custom_call.1} parent=0
    #allocation2 [shape = 'u8[131072]{0}', space=vmem, size = 0x20000, scoped, tag = 'input window, operand 0, single buffered']
    #allocation3 [shape = 's32[1]{0}', space=sflag, size = 0x4, scoped, tag = 'scoped memory for tpu_custom_call.1']
    #allocation4 [shape = 's32[1]{0}', space=sflag, size = 0x4, scoped, tag = 'scoped memory for tpu_custom_call.1']
    #allocation5 [shape = 'u8[57344]{0}', space=vmem, size = 0xe000, scoped, tag = 'input window, operand 1, single buffered']
    #allocation6 [shape = 's32[1]{0}', space=sflag, size = 0x4, scoped, tag = 'scoped memory for tpu_custom_call.1']
    #allocation7 [shape = 'u8[4096]{0}', space=vmem, size = 0x1000, scoped, tag = 'output window, operand 0, single buffered']
    %7 = vsyncpa [#allocation3], 0
    %8 = vsyncpa [#allocation6], 0
    %9 = vsyncpa [#allocation4], 0
    // Predicated region
    $region2: #{tpu_custom_call.1} parent=1 // pred_check
      _
    $region3: #{tpu_custom_call.1} parent=1 // pred_check_branch
      %11 = sbr.rel (0) target = $region5
    $region4: #{tpu_custom_call.1} parent=1 // pred_region
      %s13 = ssub.s32 4096, 4096
      %14 = vsyncadd [#allocation3], %s13
      %s15 = sshll.u32 [#allocation2], 4
      %s16 = int_to_ptr.vmem [resolvable:$true] %s15
      %21 = dma.hbm_to_vmem [thread:$0]  %s0, 4096, %s16, [#allocation3], 128, 128, 8
    $region5: #{tpu_custom_call.1} parent=1 // pred_fallthru
      _
    // Predicated region
    $region6: #{tpu_custom_call.1} parent=1 // pred_check
      _
    $region7: #{tpu_custom_call.1} parent=1 // pred_check_branch
      %23 = sbr.rel (0) target = $region9
    $region8: #{tpu_custom_call.1} parent=1 // pred_region
      %s25 = ssub.s32 1792, 1792
      %26 = vsyncadd [#allocation6], %s25
      %s27 = sshll.u32 [#allocation5], 4
      %s28 = int_to_ptr.vmem [resolvable:$true] %s27
      %33 = dma.hbm_to_vmem [thread:$0]  %s1, 1792, %s28, [#allocation6], 128, 128, 8
    $region9: #{tpu_custom_call.1} parent=1 // pred_fallthru
      _
    // Predicated region
    $region10: #{tpu_custom_call.1} parent=1 // pred_check
      _
    $region11: #{tpu_custom_call.1} parent=1 // pred_check_branch
      %35 = sbr.rel (0) target = $region13
    $region12: #{tpu_custom_call.1} parent=1 // pred_region
      %36 = dma.done [#allocation3], 4096
    $region13: #{tpu_custom_call.1} parent=1 // pred_fallthru
      _
    // Predicated region
    $region14: #{tpu_custom_call.1} parent=1 // pred_check
      _
    $region15: #{tpu_custom_call.1} parent=1 // pred_check_branch
      %38 = sbr.rel (0) target = $region17
    $region16: #{tpu_custom_call.1} parent=1 // pred_region
      %39 = dma.done [#allocation6], 1792
    $region17: #{tpu_custom_call.1} parent=1 // pred_fallthru
      _
    %v40 = vld [vmem:[#allocation2] sm:$0xff]
    %v41 = vld [vmem:[#allocation2 + $0x8] sm:$0xff]
    %v42 = vld [vmem:[#allocation2 + $0x10] sm:$0xff]
    %v43 = vld [vmem:[#allocation2 + $0x18] sm:$0xff]
    %v44 = vld [vmem:[#allocation2 + $0x20] sm:$0xff]
    %v45 = vld [vmem:[#allocation2 + $0x28] sm:$0xff]
    %v46 = vld [vmem:[#allocation2 + $0x30] sm:$0xff]
    %v47 = vld [vmem:[#allocation2 + $0x38] sm:$0xff]
    %v48 = vld [vmem:[#allocation2 + $0x40] sm:$0xff]
    %v49 = vld [vmem:[#allocation2 + $0x48] sm:$0xff]
    %v50 = vld [vmem:[#allocation2 + $0x50] sm:$0xff]
    %v51 = vld [vmem:[#allocation2 + $0x58] sm:$0xff]
    %v52 = vld [vmem:[#allocation2 + $0x60] sm:$0xff]
    %v53 = vld [vmem:[#allocation2 + $0x68] sm:$0xff]
    %v54 = vld [vmem:[#allocation2 + $0x70] sm:$0xff]
    %v55 = vld [vmem:[#allocation2 + $0x78] sm:$0xff]
    %v56 = vld [vmem:[#allocation2 + $0x80] sm:$0xff]
    %v57 = vld [vmem:[#allocation2 + $0x88] sm:$0xff]
    %v58 = vld [vmem:[#allocation2 + $0x90] sm:$0xff]
    %v59 = vld [vmem:[#allocation2 + $0x98] sm:$0xff]
    %v60 = vld [vmem:[#allocation2 + $0xa0] sm:$0xff]
    %v61 = vld [vmem:[#allocation2 + $0xa8] sm:$0xff]
    %v62 = vld [vmem:[#allocation2 + $0xb0] sm:$0xff]
    %v63 = vld [vmem:[#allocation2 + $0xb8] sm:$0xff]
    %v64 = vld [vmem:[#allocation2 + $0xc0] sm:$0xff]
    %v65 = vld [vmem:[#allocation2 + $0xc8] sm:$0xff]
    %v66 = vld [vmem:[#allocation2 + $0xd0] sm:$0xff]
    %v67 = vld [vmem:[#allocation2 + $0xd8] sm:$0xff]
    %v68 = vld [vmem:[#allocation2 + $0xe0] sm:$0xff]
    %v69 = vld [vmem:[#allocation2 + $0xe8] sm:$0xff]
    %v70 = vld [vmem:[#allocation2 + $0xf0] sm:$0xff]
    %v71 = vld [vmem:[#allocation2 + $0xf8] sm:$0xff]
    %v72 = vld [vmem:[#allocation5] sm:$0xff]
    %v73 = vld [vmem:[#allocation5 + $0x8] sm:$0x1]
    %v74 = vlaneseq
    %v75 = vshrl.u32 %v74, 7
    %v76 = vsub.s32 0, %v75
    %v77 = vrot.slane %v73, %v76
    %vm78 = vcmask 64512
    %v80 = vsel %vm78, %v40, 0
    %v83 = vsel %vm78, %v41, 0
    %v86 = vsel %vm78, %v42, 0
    %v89 = vsel %vm78, %v43, 0
    %v92 = vsel %vm78, %v44, 0
    %v95 = vsel %vm78, %v45, 0
    %v98 = vsel %vm78, %v46, 0
    %v101 = vsel %vm78, %v47, 0
    %103 = vmatprep.subr.mxu0 0.0
    %104 = vmatpush1.msra.mxu0 0.0
    %105 = vmatprep.subr.mxu0 0.0
    %106 = vmatpush1.msra.mxu0 0.0
    %107 = vmatprep.subr.mxu0 0.0
    %108 = vmatpush1.msra.mxu0 0.0
    %109 = vmatprep.subr.mxu0 0.0
    %110 = vmatpush1.msra.mxu0 0.0
    %111 = vmatprep.subr.mxu0 0.0
    %112 = vmatpush1.msra.mxu0 0.0
    %113 = vmatprep.subr.mxu0 0.0
    %114 = vmatpush1.msra.mxu0 0.0
    %115 = vmatprep.subr.mxu0 0.0
    %116 = vmatpush1.msra.mxu0 0.0
    %117 = vmatprep.subr.mxu0 0.0
    %118 = vmatpush1.msra.mxu0 0.0
    %119 = vmatprep.subr.mxu0 0.0
    %120 = vmatpush1.msra.mxu0 0.0
    %121 = vmatprep.subr.mxu0 0.0
    %122 = vmatpush1.msra.mxu0 0.0
    %123 = vmatprep.subr.mxu0 0.0
    %124 = vmatpush1.msra.mxu0 0.0
    %125 = vmatprep.subr.mxu0 0.0
    %126 = vmatpush1.msra.mxu0 0.0
    %127 = vmatprep.subr.mxu0 0.0
    %128 = vmatpush1.msra.mxu0 0.0
    %129 = vmatprep.subr.mxu0 0.0
    %130 = vmatpush1.msra.mxu0 0.0
    %131 = vmatprep.subr.mxu0 0.0
    %132 = vmatpush1.msra.mxu0 0.0
    %133 = vmatprep.subr.mxu0 0.0
    %134 = vmatpush1.msra.mxu0 %v72
    %135 = vmatprep.subr.mxu0 0.0
    %136 = vmatpush2.msra.mxu0 0.0
    %137 = vmatprep.subr.mxu0 0.0
    %138 = vmatpush2.msra.mxu0 0.0
    %139 = vmatprep.subr.mxu0 0.0
    %140 = vmatpush2.msra.mxu0 0.0
    %141 = vmatprep.subr.mxu0 0.0
    %142 = vmatpush2.msra.mxu0 0.0
    %143 = vmatprep.subr.mxu0 0.0
    %144 = vmatpush2.msra.mxu0 0.0
    %145 = vmatprep.subr.mxu0 0.0
    %146 = vmatpush2.msra.mxu0 0.0
    %147 = vmatprep.subr.mxu0 0.0
    %148 = vmatpush2.msra.mxu0 0.0
    %149 = vmatprep.subr.mxu0 0.0
    %150 = vmatpush2.msra.mxu0 0.0
    %151 = vmatprep.subr.mxu0 0.0
    %152 = vmatpush2.msra.mxu0 0.0
    %153 = vmatprep.subr.mxu0 0.0
    %154 = vmatpush2.msra.mxu0 0.0
    %155 = vmatprep.subr.mxu0 0.0
    %156 = vmatpush2.msra.mxu0 0.0
    %157 = vmatprep.subr.mxu0 0.0
    %158 = vmatpush2.msra.mxu0 0.0
    %159 = vmatprep.subr.mxu0 0.0
    %160 = vmatpush2.msra.mxu0 0.0
    %161 = vmatprep.subr.mxu0 0.0
    %162 = vmatpush2.msra.mxu0 0.0
    %163 = vmatprep.subr.mxu0 0.0
    %164 = vmatpush2.msra.mxu0 0.0
    %165 = vmatprep.subr.mxu0 0.0
    %166 = vmatpush2.msra.mxu0 0.0
    %167 = vmatprep.mubr.f32.mxu0 0.0
    %168 = vmatmul.mubr.f32.gmra.mxu0 %v80
    %v169 = vpop.f32.mrf.mxu0
    %v170 = vadd.f32 %v77, %v169
    %v171 = vpop.f32.mrf.mxu0
    %172 = vmatprep.mubr.f32.mxu0 0.0
    %173 = vmatmul.mubr.f32.gmra.mxu0 %v83
    %v174 = vpop.f32.mrf.mxu0
    %v175 = vadd.f32 %v77, %v174
    %v176 = vpop.f32.mrf.mxu0
    %177 = vmatprep.mubr.f32.mxu0 0.0
    %178 = vmatmul.mubr.f32.gmra.mxu0 %v86
    %v179 = vpop.f32.mrf.mxu0
    %v180 = vadd.f32 %v77, %v179
    %v181 = vpop.f32.mrf.mxu0
    %182 = vmatprep.mubr.f32.mxu0 0.0
    %183 = vmatmul.mubr.f32.gmra.mxu0 %v89
    %v184 = vpop.f32.mrf.mxu0
    %v185 = vadd.f32 %v77, %v184
    %v186 = vpop.f32.mrf.mxu0
    %187 = vmatprep.mubr.f32.mxu0 0.0
    %188 = vmatmul.mubr.f32.gmra.mxu0 %v92
    %v189 = vpop.f32.mrf.mxu0
    %v190 = vadd.f32 %v77, %v189
    %v191 = vpop.f32.mrf.mxu0
    %192 = vmatprep.mubr.f32.mxu0 0.0
    %193 = vmatmul.mubr.f32.gmra.mxu0 %v95
    %v194 = vpop.f32.mrf.mxu0
    %v195 = vadd.f32 %v77, %v194
    %v196 = vpop.f32.mrf.mxu0
    %197 = vmatprep.mubr.f32.mxu0 0.0
    %198 = vmatmul.mubr.f32.gmra.mxu0 %v98
    %v199 = vpop.f32.mrf.mxu0
    %v200 = vadd.f32 %v77, %v199
    %v201 = vpop.f32.mrf.mxu0
    %202 = vmatprep.mubr.f32.mxu0 0.0
    %203 = vmatmul.mubr.f32.gmra.mxu0 %v101
    %v204 = vpop.f32.mrf.mxu0
    %v205 = vadd.f32 %v77, %v204
    %v206 = vpop.f32.mrf.mxu0
    %207 = vdwg.mxu0
    %v208 = vld [vmem:[#allocation5 + $0x10] sm:$0xff]
    %v209 = vld [vmem:[#allocation5 + $0x18] sm:$0x1]
    %v210 = vlaneseq
    %v211 = vshrl.u32 %v210, 7
    %v212 = vsub.s32 0, %v211
    %v213 = vrot.slane %v209, %v212
    %v215 = vsel %vm78, %v48, 0
    %v218 = vsel %vm78, %v49, 0
    %v221 = vsel %vm78, %v50, 0
    %v224 = vsel %vm78, %v51, 0
    %v227 = vsel %vm78, %v52, 0
    %v230 = vsel %vm78, %v53, 0
    %v233 = vsel %vm78, %v54, 0
    %v236 = vsel %vm78, %v55, 0
    %v239 = vsel %vm78, %v56, 0
    %v242 = vsel %vm78, %v57, 0
    %v245 = vsel %vm78, %v58, 0
    %v248 = vsel %vm78, %v59, 0
    %250 = vmatprep.subr.mxu0 0.0
    %251 = vmatpush1.msra.mxu0 0.0
    %252 = vmatprep.subr.mxu0 0.0
    %253 = vmatpush1.msra.mxu0 0.0
    %254 = vmatprep.subr.mxu0 0.0
    %255 = vmatpush1.msra.mxu0 0.0
    %256 = vmatprep.subr.mxu0 0.0
    %257 = vmatpush1.msra.mxu0 0.0
    %258 = vmatprep.subr.mxu0 0.0
    %259 = vmatpush1.msra.mxu0 0.0
    %260 = vmatprep.subr.mxu0 0.0
    %261 = vmatpush1.msra.mxu0 0.0
    %262 = vmatprep.subr.mxu0 0.0
    %263 = vmatpush1.msra.mxu0 0.0
    %264 = vmatprep.subr.mxu0 0.0
    %265 = vmatpush1.msra.mxu0 0.0
    %266 = vmatprep.subr.mxu0 0.0
    %267 = vmatpush1.msra.mxu0 0.0
    %268 = vmatprep.subr.mxu0 0.0
    %269 = vmatpush1.msra.mxu0 0.0
    %270 = vmatprep.subr.mxu0 0.0
    %271 = vmatpush1.msra.mxu0 0.0
    %272 = vmatprep.subr.mxu0 0.0
    %273 = vmatpush1.msra.mxu0 0.0
    %274 = vmatprep.subr.mxu0 0.0
    %275 = vmatpush1.msra.mxu0 0.0
    %276 = vmatprep.subr.mxu0 0.0
    %277 = vmatpush1.msra.mxu0 0.0
    %278 = vmatprep.subr.mxu0 0.0
    %279 = vmatpush1.msra.mxu0 0.0
    %280 = vmatprep.subr.mxu0 0.0
    %281 = vmatpush1.msra.mxu0 %v208
    %282 = vmatprep.subr.mxu0 0.0
    %283 = vmatpush2.msra.mxu0 0.0
    %284 = vmatprep.subr.mxu0 0.0
    %285 = vmatpush2.msra.mxu0 0.0
    %286 = vmatprep.subr.mxu0 0.0
    %287 = vmatpush2.msra.mxu0 0.0
    %288 = vmatprep.subr.mxu0 0.0
    %289 = vmatpush2.msra.mxu0 0.0
    %290 = vmatprep.subr.mxu0 0.0
    %291 = vmatpush2.msra.mxu0 0.0
    %292 = vmatprep.subr.mxu0 0.0
    %293 = vmatpush2.msra.mxu0 0.0
    %294 = vmatprep.subr.mxu0 0.0
    %295 = vmatpush2.msra.mxu0 0.0
    %296 = vmatprep.subr.mxu0 0.0
    %297 = vmatpush2.msra.mxu0 0.0
    %298 = vmatprep.subr.mxu0 0.0
    %299 = vmatpush2.msra.mxu0 0.0
    %300 = vmatprep.subr.mxu0 0.0
    %301 = vmatpush2.msra.mxu0 0.0
    %302 = vmatprep.subr.mxu0 0.0
    %303 = vmatpush2.msra.mxu0 0.0
    %304 = vmatprep.subr.mxu0 0.0
    %305 = vmatpush2.msra.mxu0 0.0
    %306 = vmatprep.subr.mxu0 0.0
    %307 = vmatpush2.msra.mxu0 0.0
    %308 = vmatprep.subr.mxu0 0.0
    %309 = vmatpush2.msra.mxu0 0.0
    %310 = vmatprep.subr.mxu0 0.0
    %311 = vmatpush2.msra.mxu0 0.0
    %312 = vmatprep.subr.mxu0 0.0
    %313 = vmatpush2.msra.mxu0 0.0
    %314 = vmatprep.mubr.f32.mxu0 0.0
    %315 = vmatmul.mubr.f32.gmra.mxu0 %v215
    %v316 = vpop.f32.mrf.mxu0
    %v317 = vadd.f32 %v213, %v316
    %v318 = vpop.f32.mrf.mxu0
    %319 = vmatprep.mubr.f32.mxu0 0.0
    %320 = vmatmul.mubr.f32.gmra.mxu0 %v218
    %v321 = vpop.f32.mrf.mxu0
    %v322 = vadd.f32 %v213, %v321
    %v323 = vpop.f32.mrf.mxu0
    %324 = vmatprep.mubr.f32.mxu0 0.0
    %325 = vmatmul.mubr.f32.gmra.mxu0 %v221
    %v326 = vpop.f32.mrf.mxu0
    %v327 = vadd.f32 %v213, %v326
    %v328 = vpop.f32.mrf.mxu0
    %329 = vmatprep.mubr.f32.mxu0 0.0
    %330 = vmatmul.mubr.f32.gmra.mxu0 %v224
    %v331 = vpop.f32.mrf.mxu0
    %v332 = vadd.f32 %v213, %v331
    %v333 = vpop.f32.mrf.mxu0
    %334 = vmatprep.mubr.f32.mxu0 0.0
    %335 = vmatmul.mubr.f32.gmra.mxu0 %v227
    %v336 = vpop.f32.mrf.mxu0
    %v337 = vadd.f32 %v213, %v336
    %v338 = vpop.f32.mrf.mxu0
    %339 = vmatprep.mubr.f32.mxu0 0.0
    %340 = vmatmul.mubr.f32.gmra.mxu0 %v230
    %v341 = vpop.f32.mrf.mxu0
    %v342 = vadd.f32 %v213, %v341
    %v343 = vpop.f32.mrf.mxu0
    %344 = vmatprep.mubr.f32.mxu0 0.0
    %345 = vmatmul.mubr.f32.gmra.mxu0 %v233
    %v346 = vpop.f32.mrf.mxu0
    %v347 = vadd.f32 %v213, %v346
    %v348 = vpop.f32.mrf.mxu0
    %349 = vmatprep.mubr.f32.mxu0 0.0
    %350 = vmatmul.mubr.f32.gmra.mxu0 %v236
    %v351 = vpop.f32.mrf.mxu0
    %v352 = vadd.f32 %v213, %v351
    %v353 = vpop.f32.mrf.mxu0
    %354 = vmatprep.mubr.f32.mxu0 0.0
    %355 = vmatmul.mubr.f32.gmra.mxu0 %v239
    %v356 = vpop.f32.mrf.mxu0
    %v357 = vadd.f32 %v213, %v356
    %v358 = vpop.f32.mrf.mxu0
    %359 = vmatprep.mubr.f32.mxu0 0.0
    %360 = vmatmul.mubr.f32.gmra.mxu0 %v242
    %v361 = vpop.f32.mrf.mxu0
    %v362 = vadd.f32 %v213, %v361
    %v363 = vpop.f32.mrf.mxu0
    %364 = vmatprep.mubr.f32.mxu0 0.0
    %365 = vmatmul.mubr.f32.gmra.mxu0 %v245
    %v366 = vpop.f32.mrf.mxu0
    %v367 = vadd.f32 %v213, %v366
    %v368 = vpop.f32.mrf.mxu0
    %369 = vmatprep.mubr.f32.mxu0 0.0
    %370 = vmatmul.mubr.f32.gmra.mxu0 %v248
    %v371 = vpop.f32.mrf.mxu0
    %v372 = vadd.f32 %v213, %v371
    %v373 = vpop.f32.mrf.mxu0
    %374 = vdwg.mxu0
    %v375 = vld [vmem:[#allocation5 + $0x20] sm:$0xff]
    %v376 = vld [vmem:[#allocation5 + $0x28] sm:$0xff]
    %vm377 = vcmask 130048
    %v379 = vsel %vm377, %v170, 0
    %v382 = vsel %vm377, %v175, 0
    %v385 = vsel %vm377, %v180, 0
    %v388 = vsel %vm377, %v185, 0
    %v391 = vsel %vm377, %v190, 0
    %v394 = vsel %vm377, %v195, 0
    %v397 = vsel %vm377, %v200, 0
    %v400 = vsel %vm377, %v205, 0
    %402 = vmatprep.subr.mxu0 0.0
    %403 = vmatpush1.msra.mxu0 0.0
    %404 = vmatprep.subr.mxu0 0.0
    %405 = vmatpush1.msra.mxu0 0.0
    %406 = vmatprep.subr.mxu0 0.0
    %407 = vmatpush1.msra.mxu0 0.0
    %408 = vmatprep.subr.mxu0 0.0
    %409 = vmatpush1.msra.mxu0 0.0
    %410 = vmatprep.subr.mxu0 0.0
    %411 = vmatpush1.msra.mxu0 0.0
    %412 = vmatprep.subr.mxu0 0.0
    %413 = vmatpush1.msra.mxu0 0.0
    %414 = vmatprep.subr.mxu0 0.0
    %415 = vmatpush1.msra.mxu0 0.0
    %416 = vmatprep.subr.mxu0 0.0
    %417 = vmatpush1.msra.mxu0 0.0
    %418 = vmatprep.subr.mxu0 0.0
    %419 = vmatpush1.msra.mxu0 0.0
    %420 = vmatprep.subr.mxu0 0.0
    %421 = vmatpush1.msra.mxu0 0.0
    %422 = vmatprep.subr.mxu0 0.0
    %423 = vmatpush1.msra.mxu0 0.0
    %424 = vmatprep.subr.mxu0 0.0
    %425 = vmatpush1.msra.mxu0 0.0
    %426 = vmatprep.subr.mxu0 0.0
    %427 = vmatpush1.msra.mxu0 0.0
    %428 = vmatprep.subr.mxu0 0.0
    %429 = vmatpush1.msra.mxu0 0.0
    %430 = vmatprep.subr.mxu0 0.0
    %431 = vmatpush1.msra.mxu0 %v376
    %432 = vmatprep.subr.mxu0 0.0
    %433 = vmatpush1.msra.mxu0 %v375
    %434 = vmatprep.subr.mxu0 0.0
    %435 = vmatpush2.msra.mxu0 0.0
    %436 = vmatprep.subr.mxu0 0.0
    %437 = vmatpush2.msra.mxu0 0.0
    %438 = vmatprep.subr.mxu0 0.0
    %439 = vmatpush2.msra.mxu0 0.0
    %440 = vmatprep.subr.mxu0 0.0
    %441 = vmatpush2.msra.mxu0 0.0
    %442 = vmatprep.subr.mxu0 0.0
    %443 = vmatpush2.msra.mxu0 0.0
    %444 = vmatprep.subr.mxu0 0.0
    %445 = vmatpush2.msra.mxu0 0.0
    %446 = vmatprep.subr.mxu0 0.0
    %447 = vmatpush2.msra.mxu0 0.0
    %448 = vmatprep.subr.mxu0 0.0
    %449 = vmatpush2.msra.mxu0 0.0
    %450 = vmatprep.subr.mxu0 0.0
    %451 = vmatpush2.msra.mxu0 0.0
    %452 = vmatprep.subr.mxu0 0.0
    %453 = vmatpush2.msra.mxu0 0.0
    %454 = vmatprep.subr.mxu0 0.0
    %455 = vmatpush2.msra.mxu0 0.0
    %456 = vmatprep.subr.mxu0 0.0
    %457 = vmatpush2.msra.mxu0 0.0
    %458 = vmatprep.subr.mxu0 0.0
    %459 = vmatpush2.msra.mxu0 0.0
    %460 = vmatprep.subr.mxu0 0.0
    %461 = vmatpush2.msra.mxu0 0.0
    %462 = vmatprep.subr.mxu0 0.0
    %463 = vmatpush2.msra.mxu0 0.0
    %464 = vmatprep.subr.mxu0 0.0
    %465 = vmatpush2.msra.mxu0 0.0
    %466 = vmatprep.mubr.f32.mxu0 0.0
    %467 = vmatmul.mubr.f32.gmra.mxu0 %v379
    %v468 = vpop.f32.mrf.mxu0
    %v469 = vadd.f32 0.0, %v468
    %v470 = vpop.f32.mrf.mxu0
    %471 = vmatprep.mubr.f32.mxu0 0.0
    %472 = vmatmul.mubr.f32.gmra.mxu0 %v382
    %v473 = vpop.f32.mrf.mxu0
    %v474 = vadd.f32 0.0, %v473
    %v475 = vpop.f32.mrf.mxu0
    %476 = vmatprep.mubr.f32.mxu0 0.0
    %477 = vmatmul.mubr.f32.gmra.mxu0 %v385
    %v478 = vpop.f32.mrf.mxu0
    %v479 = vadd.f32 0.0, %v478
    %v480 = vpop.f32.mrf.mxu0
    %481 = vmatprep.mubr.f32.mxu0 0.0
    %482 = vmatmul.mubr.f32.gmra.mxu0 %v388
    %v483 = vpop.f32.mrf.mxu0
    %v484 = vadd.f32 0.0, %v483
    %v485 = vpop.f32.mrf.mxu0
    %486 = vmatprep.mubr.f32.mxu0 0.0
    %487 = vmatmul.mubr.f32.gmra.mxu0 %v391
    %v488 = vpop.f32.mrf.mxu0
    %v489 = vadd.f32 0.0, %v488
    %v490 = vpop.f32.mrf.mxu0
    %491 = vmatprep.mubr.f32.mxu0 0.0
    %492 = vmatmul.mubr.f32.gmra.mxu0 %v394
    %v493 = vpop.f32.mrf.mxu0
    %v494 = vadd.f32 0.0, %v493
    %v495 = vpop.f32.mrf.mxu0
    %496 = vmatprep.mubr.f32.mxu0 0.0
    %497 = vmatmul.mubr.f32.gmra.mxu0 %v397
    %v498 = vpop.f32.mrf.mxu0
    %v499 = vadd.f32 0.0, %v498
    %v500 = vpop.f32.mrf.mxu0
    %501 = vmatprep.mubr.f32.mxu0 0.0
    %502 = vmatmul.mubr.f32.gmra.mxu0 %v400
    %v503 = vpop.f32.mrf.mxu0
    %v504 = vadd.f32 0.0, %v503
    %v505 = vpop.f32.mrf.mxu0
    %506 = vdwg.mxu0
    %515 = vrot.lane.b32.xlu0 %v469, 112
    %v516 = vpop.permute.xlu0 %515
    %517 = vrot.lane.b32.xlu0 %v474, 112
    %v518 = vpop.permute.xlu0 %517
    %519 = vrot.lane.b32.xlu0 %v479, 112
    %v520 = vpop.permute.xlu0 %519
    %521 = vrot.lane.b32.xlu0 %v484, 112
    %v522 = vpop.permute.xlu0 %521
    %523 = vrot.lane.b32.xlu0 %v489, 112
    %v524 = vpop.permute.xlu0 %523
    %525 = vrot.lane.b32.xlu0 %v494, 112
    %v526 = vpop.permute.xlu0 %525
    %527 = vrot.lane.b32.xlu0 %v499, 112
    %v528 = vpop.permute.xlu0 %527
    %529 = vrot.lane.b32.xlu0 %v504, 112
    %v530 = vpop.permute.xlu0 %529
    %539 = vxpose.xlu0.b32.start [1/16] %v516, 128
    %540 = vxpose.xlu0.b32.cont [2/16] %v518, 128
    %541 = vxpose.xlu0.b32.cont [3/16] 0.0, 128
    %542 = vxpose.xlu0.b32.cont [4/16] 0.0, 128
    %543 = vxpose.xlu0.b32.cont [5/16] 0.0, 128
    %544 = vxpose.xlu0.b32.cont [6/16] 0.0, 128
    %545 = vxpose.xlu0.b32.cont [7/16] 0.0, 128
    %546 = vxpose.xlu0.b32.cont [8/16] 0.0, 128
    %547 = vxpose.xlu0.b32.cont [9/16] 0.0, 128
    %548 = vxpose.xlu0.b32.cont [10/16] 0.0, 128
    %549 = vxpose.xlu0.b32.cont [11/16] 0.0, 128
    %550 = vxpose.xlu0.b32.cont [12/16] 0.0, 128
    %551 = vxpose.xlu0.b32.cont [13/16] 0.0, 128
    %552 = vxpose.xlu0.b32.cont [14/16] 0.0, 128
    %553 = vxpose.xlu0.b32.cont [15/16] 0.0, 128
    %554 = vxpose.xlu0.b32.end [16/16] 0.0, 128
    %v555 = vpop.trf.xlu0
    %v556 = vpop.trf.xlu0
    %v557 = vpop.trf.xlu0
    %v558 = vpop.trf.xlu0
    %v559 = vpop.trf.xlu0
    %v560 = vpop.trf.xlu0
    %v561 = vpop.trf.xlu0
    %v562 = vpop.trf.xlu0
    %v563 = vpop.trf.xlu0
    %v564 = vpop.trf.xlu0
    %v565 = vpop.trf.xlu0
    %v566 = vpop.trf.xlu0
    %v567 = vpop.trf.xlu0
    %v568 = vpop.trf.xlu0
    %v569 = vpop.trf.xlu0
    %v570 = vpop.trf.xlu0
    %571 = vxpose.xlu0.b32.start [1/16] %v520, 128
    %572 = vxpose.xlu0.b32.cont [2/16] %v522, 128
    %573 = vxpose.xlu0.b32.cont [3/16] 0.0, 128
    %574 = vxpose.xlu0.b32.cont [4/16] 0.0, 128
    %575 = vxpose.xlu0.b32.cont [5/16] 0.0, 128
    %576 = vxpose.xlu0.b32.cont [6/16] 0.0, 128
    %577 = vxpose.xlu0.b32.cont [7/16] 0.0, 128
    %578 = vxpose.xlu0.b32.cont [8/16] 0.0, 128
    %579 = vxpose.xlu0.b32.cont [9/16] 0.0, 128
    %580 = vxpose.xlu0.b32.cont [10/16] 0.0, 128
    %581 = vxpose.xlu0.b32.cont [11/16] 0.0, 128
    %582 = vxpose.xlu0.b32.cont [12/16] 0.0, 128
    %583 = vxpose.xlu0.b32.cont [13/16] 0.0, 128
    %584 = vxpose.xlu0.b32.cont [14/16] 0.0, 128
    %585 = vxpose.xlu0.b32.cont [15/16] 0.0, 128
    %586 = vxpose.xlu0.b32.end [16/16] 0.0, 128
    %v587 = vpop.trf.xlu0
    %v588 = vpop.trf.xlu0
    %v589 = vpop.trf.xlu0
    %v590 = vpop.trf.xlu0
    %v591 = vpop.trf.xlu0
    %v592 = vpop.trf.xlu0
    %v593 = vpop.trf.xlu0
    %v594 = vpop.trf.xlu0
    %v595 = vpop.trf.xlu0
    %v596 = vpop.trf.xlu0
    %v597 = vpop.trf.xlu0
    %v598 = vpop.trf.xlu0
    %v599 = vpop.trf.xlu0
    %v600 = vpop.trf.xlu0
    %v601 = vpop.trf.xlu0
    %v602 = vpop.trf.xlu0
    %603 = vxpose.xlu0.b32.start [1/16] %v524, 128
    %604 = vxpose.xlu0.b32.cont [2/16] %v526, 128
    %605 = vxpose.xlu0.b32.cont [3/16] 0.0, 128
    %606 = vxpose.xlu0.b32.cont [4/16] 0.0, 128
    %607 = vxpose.xlu0.b32.cont [5/16] 0.0, 128
    %608 = vxpose.xlu0.b32.cont [6/16] 0.0, 128
    %609 = vxpose.xlu0.b32.cont [7/16] 0.0, 128
    %610 = vxpose.xlu0.b32.cont [8/16] 0.0, 128
    %611 = vxpose.xlu0.b32.cont [9/16] 0.0, 128
    %612 = vxpose.xlu0.b32.cont [10/16] 0.0, 128
    %613 = vxpose.xlu0.b32.cont [11/16] 0.0, 128
    %614 = vxpose.xlu0.b32.cont [12/16] 0.0, 128
    %615 = vxpose.xlu0.b32.cont [13/16] 0.0, 128
    %616 = vxpose.xlu0.b32.cont [14/16] 0.0, 128
    %617 = vxpose.xlu0.b32.cont [15/16] 0.0, 128
    %618 = vxpose.xlu0.b32.end [16/16] 0.0, 128
    %v619 = vpop.trf.xlu0
    %v620 = vpop.trf.xlu0
    %v621 = vpop.trf.xlu0
    %v622 = vpop.trf.xlu0
    %v623 = vpop.trf.xlu0
    %v624 = vpop.trf.xlu0
    %v625 = vpop.trf.xlu0
    %v626 = vpop.trf.xlu0
    %v627 = vpop.trf.xlu0
    %v628 = vpop.trf.xlu0
    %v629 = vpop.trf.xlu0
    %v630 = vpop.trf.xlu0
    %v631 = vpop.trf.xlu0
    %v632 = vpop.trf.xlu0
    %v633 = vpop.trf.xlu0
    %v634 = vpop.trf.xlu0
    %635 = vxpose.xlu0.b32.start [1/16] %v528, 128
    %636 = vxpose.xlu0.b32.cont [2/16] %v530, 128
    %637 = vxpose.xlu0.b32.cont [3/16] 0.0, 128
    %638 = vxpose.xlu0.b32.cont [4/16] 0.0, 128
    %639 = vxpose.xlu0.b32.cont [5/16] 0.0, 128
    %640 = vxpose.xlu0.b32.cont [6/16] 0.0, 128
    %641 = vxpose.xlu0.b32.cont [7/16] 0.0, 128
    %642 = vxpose.xlu0.b32.cont [8/16] 0.0, 128
    %643 = vxpose.xlu0.b32.cont [9/16] 0.0, 128
    %644 = vxpose.xlu0.b32.cont [10/16] 0.0, 128
    %645 = vxpose.xlu0.b32.cont [11/16] 0.0, 128
    %646 = vxpose.xlu0.b32.cont [12/16] 0.0, 128
    %647 = vxpose.xlu0.b32.cont [13/16] 0.0, 128
    %648 = vxpose.xlu0.b32.cont [14/16] 0.0, 128
    %649 = vxpose.xlu0.b32.cont [15/16] 0.0, 128
    %650 = vxpose.xlu0.b32.end [16/16] 0.0, 128
    %v651 = vpop.trf.xlu0
    %v652 = vpop.trf.xlu0
    %v653 = vpop.trf.xlu0
    %v654 = vpop.trf.xlu0
    %v655 = vpop.trf.xlu0
    %v656 = vpop.trf.xlu0
    %v657 = vpop.trf.xlu0
    %v658 = vpop.trf.xlu0
    %v659 = vpop.trf.xlu0
    %v660 = vpop.trf.xlu0
    %v661 = vpop.trf.xlu0
    %v662 = vpop.trf.xlu0
    %v663 = vpop.trf.xlu0
    %v664 = vpop.trf.xlu0
    %v665 = vpop.trf.xlu0
    %v666 = vpop.trf.xlu0
    %667 = vset.pattern.permute.xlu0 17
    %668 = vperm.xlu0 %667, %v469
    %v669 = vpop.permute.xlu0 %668
    %671 = vset.pattern.permute.xlu0 17
    %672 = vperm.xlu0 %671, %v474
    %v673 = vpop.permute.xlu0 %672
    %675 = vset.pattern.permute.xlu0 17
    %676 = vperm.xlu0 %675, %v479
    %v677 = vpop.permute.xlu0 %676
    %679 = vset.pattern.permute.xlu0 17
    %680 = vperm.xlu0 %679, %v484
    %v681 = vpop.permute.xlu0 %680
    %683 = vset.pattern.permute.xlu0 17
    %684 = vperm.xlu0 %683, %v489
    %v685 = vpop.permute.xlu0 %684
    %687 = vset.pattern.permute.xlu0 17
    %688 = vperm.xlu0 %687, %v494
    %v689 = vpop.permute.xlu0 %688
    %691 = vset.pattern.permute.xlu0 17
    %692 = vperm.xlu0 %691, %v499
    %v693 = vpop.permute.xlu0 %692
    %695 = vset.pattern.permute.xlu0 17
    %696 = vperm.xlu0 %695, %v504
    %v697 = vpop.permute.xlu0 %696
    %v699 = vlaneseq
    %v700 = vshrl.u32 %v699, 7
    %v701 = vsub.s32 0, %v700
    %v702 = vrot.slane %v555, %v701
    %v703 = vlaneseq
    %v704 = vshrl.u32 %v703, 7
    %v705 = vsub.s32 0, %v704
    %v706 = vrot.slane %v587, %v705
    %v707 = vlaneseq
    %v708 = vshrl.u32 %v707, 7
    %v709 = vsub.s32 0, %v708
    %v710 = vrot.slane %v619, %v709
    %v711 = vlaneseq
    %v712 = vshrl.u32 %v711, 7
    %v713 = vsub.s32 0, %v712
    %v714 = vrot.slane %v651, %v713
    %v715 = vadd.f32 %v669, %v702
    %v716 = vadd.f32 %v673, %v702
    %v717 = vadd.f32 %v677, %v706
    %v718 = vadd.f32 %v681, %v706
    %v719 = vadd.f32 %v685, %v710
    %v720 = vadd.f32 %v689, %v710
    %v721 = vadd.f32 %v693, %v714
    %v722 = vadd.f32 %v697, %v714
    %vm723 = vcmp.gt.f32.partialorder %v715, 0.0
    %vm724 = vcmp.gt.f32.partialorder %v716, 0.0
    %vm725 = vcmp.gt.f32.partialorder %v717, 0.0
    %vm726 = vcmp.gt.f32.partialorder %v718, 0.0
    %vm727 = vcmp.gt.f32.partialorder %v719, 0.0
    %vm728 = vcmp.gt.f32.partialorder %v720, 0.0
    %vm729 = vcmp.gt.f32.partialorder %v721, 0.0
    %vm730 = vcmp.gt.f32.partialorder %v722, 0.0
    %v731 = vmin.f32 %v715, 0.0
    %v732 = vmin.f32 %v716, 0.0
    %v733 = vmin.f32 %v717, 0.0
    %v734 = vmin.f32 %v718, 0.0
    %v735 = vmin.f32 %v719, 0.0
    %v736 = vmin.f32 %v720, 0.0
    %v737 = vmin.f32 %v721, 0.0
    %v738 = vmin.f32 %v722, 0.0
    %v739 = vmul.f32 %v731, 1.442695
    %v740 = vpow.pop %v739
    %v741 = vmul.f32 %v732, 1.442695
    %v742 = vpow.pop %v741
    %v743 = vmul.f32 %v733, 1.442695
    %v744 = vpow.pop %v743
    %v745 = vmul.f32 %v734, 1.442695
    %v746 = vpow.pop %v745
    %v747 = vmul.f32 %v735, 1.442695
    %v748 = vpow.pop %v747
    %v749 = vmul.f32 %v736, 1.442695
    %v750 = vpow.pop %v749
    %v751 = vmul.f32 %v737, 1.442695
    %v752 = vpow.pop %v751
    %v753 = vmul.f32 %v738, 1.442695
    %v754 = vpow.pop %v753
    %v755 = vsub.f32 %v740, 1.0
    %v756 = vsub.f32 %v742, 1.0
    %v757 = vsub.f32 %v744, 1.0
    %v758 = vsub.f32 %v746, 1.0
    %v759 = vsub.f32 %v748, 1.0
    %v760 = vsub.f32 %v750, 1.0
    %v761 = vsub.f32 %v752, 1.0
    %v762 = vsub.f32 %v754, 1.0
    %v763 = vsel %vm723, %v715, %v755
    %v764 = vsel %vm724, %v716, %v756
    %v765 = vsel %vm725, %v717, %v757
    %v766 = vsel %vm726, %v718, %v758
    %v767 = vsel %vm727, %v719, %v759
    %v768 = vsel %vm728, %v720, %v760
    %v769 = vsel %vm729, %v721, %v761
    %v770 = vsel %vm730, %v722, %v762
    %v771 = vmul.f32 %v60, %v763
    %v772 = vmul.f32 %v61, %v764
    %v773 = vmul.f32 %v62, %v765
    %v774 = vmul.f32 %v63, %v766
    %v775 = vmul.f32 %v64, %v767
    %v776 = vmul.f32 %v65, %v768
    %v777 = vmul.f32 %v66, %v769
    %v778 = vmul.f32 %v67, %v770
    %v780 = vsel %vm377, %v771, 0
    %v783 = vsel %vm377, %v772, 0
    %785 = vmatprep.subr.mxu0 0.0
    %786 = vmatpush1.msra.mxu0 0.0
    %787 = vmatprep.subr.mxu0 0.0
    %788 = vmatpush1.msra.mxu0 0.0
    %789 = vmatprep.subr.mxu0 0.0
    %790 = vmatpush1.msra.mxu0 0.0
    %791 = vmatprep.subr.mxu0 0.0
    %792 = vmatpush1.msra.mxu0 0.0
    %793 = vmatprep.subr.mxu0 0.0
    %794 = vmatpush1.msra.mxu0 0.0
    %795 = vmatprep.subr.mxu0 0.0
    %796 = vmatpush1.msra.mxu0 0.0
    %797 = vmatprep.subr.mxu0 0.0
    %798 = vmatpush1.msra.mxu0 0.0
    %799 = vmatprep.subr.mxu0 0.0
    %800 = vmatpush1.msra.mxu0 0.0
    %801 = vmatprep.subr.mxu0 0.0
    %802 = vmatpush1.msra.mxu0 0.0
    %803 = vmatprep.subr.mxu0 0.0
    %804 = vmatpush1.msra.mxu0 0.0
    %805 = vmatprep.subr.mxu0 0.0
    %806 = vmatpush1.msra.mxu0 0.0
    %807 = vmatprep.subr.mxu0 0.0
    %808 = vmatpush1.msra.mxu0 0.0
    %809 = vmatprep.subr.mxu0 0.0
    %810 = vmatpush1.msra.mxu0 0.0
    %811 = vmatprep.subr.mxu0 0.0
    %812 = vmatpush1.msra.mxu0 0.0
    %813 = vmatprep.subr.mxu0 0.0
    %814 = vmatpush1.msra.mxu0 %v474
    %815 = vmatprep.subr.mxu0 0.0
    %816 = vmatpush1.msra.mxu0 %v469
    %817 = vmatprep.subr.mxu0 0.0
    %818 = vmatpush2.msra.mxu0 0.0
    %819 = vmatprep.subr.mxu0 0.0
    %820 = vmatpush2.msra.mxu0 0.0
    %821 = vmatprep.subr.mxu0 0.0
    %822 = vmatpush2.msra.mxu0 0.0
    %823 = vmatprep.subr.mxu0 0.0
    %824 = vmatpush2.msra.mxu0 0.0
    %825 = vmatprep.subr.mxu0 0.0
    %826 = vmatpush2.msra.mxu0 0.0
    %827 = vmatprep.subr.mxu0 0.0
    %828 = vmatpush2.msra.mxu0 0.0
    %829 = vmatprep.subr.mxu0 0.0
    %830 = vmatpush2.msra.mxu0 0.0
    %831 = vmatprep.subr.mxu0 0.0
    %832 = vmatpush2.msra.mxu0 0.0
    %833 = vmatprep.subr.mxu0 0.0
    %834 = vmatpush2.msra.mxu0 0.0
    %835 = vmatprep.subr.mxu0 0.0
    %836 = vmatpush2.msra.mxu0 0.0
    %837 = vmatprep.subr.mxu0 0.0
    %838 = vmatpush2.msra.mxu0 0.0
    %839 = vmatprep.subr.mxu0 0.0
    %840 = vmatpush2.msra.mxu0 0.0
    %841 = vmatprep.subr.mxu0 0.0
    %842 = vmatpush2.msra.mxu0 0.0
    %843 = vmatprep.subr.mxu0 0.0
    %844 = vmatpush2.msra.mxu0 0.0
    %845 = vmatprep.subr.mxu0 0.0
    %846 = vmatpush2.msra.mxu0 0.0
    %847 = vmatprep.subr.mxu0 0.0
    %848 = vmatpush2.msra.mxu0 0.0
    %849 = vmatprep.mubr.f32.mxu0 0.0
    %850 = vmatmul.mubr.f32.gmra.mxu0 %v780
    %v851 = vpop.f32.mrf.mxu0
    %v852 = vadd.f32 0.0, %v851
    %v853 = vpop.f32.mrf.mxu0
    %854 = vmatprep.mubr.f32.mxu0 0.0
    %855 = vmatmul.mubr.f32.gmra.mxu0 %v783
    %v856 = vpop.f32.mrf.mxu0
    %v857 = vadd.f32 0.0, %v856
    %v858 = vpop.f32.mrf.mxu0
    %859 = vdwg.mxu0
    %v861 = vsel %vm377, %v773, 0
    %v864 = vsel %vm377, %v774, 0
    %866 = vmatprep.subr.mxu0 0.0
    %867 = vmatpush1.msra.mxu0 0.0
    %868 = vmatprep.subr.mxu0 0.0
    %869 = vmatpush1.msra.mxu0 0.0
    %870 = vmatprep.subr.mxu0 0.0
    %871 = vmatpush1.msra.mxu0 0.0
    %872 = vmatprep.subr.mxu0 0.0
    %873 = vmatpush1.msra.mxu0 0.0
    %874 = vmatprep.subr.mxu0 0.0
    %875 = vmatpush1.msra.mxu0 0.0
    %876 = vmatprep.subr.mxu0 0.0
    %877 = vmatpush1.msra.mxu0 0.0
    %878 = vmatprep.subr.mxu0 0.0
    %879 = vmatpush1.msra.mxu0 0.0
    %880 = vmatprep.subr.mxu0 0.0
    %881 = vmatpush1.msra.mxu0 0.0
    %882 = vmatprep.subr.mxu0 0.0
    %883 = vmatpush1.msra.mxu0 0.0
    %884 = vmatprep.subr.mxu0 0.0
    %885 = vmatpush1.msra.mxu0 0.0
    %886 = vmatprep.subr.mxu0 0.0
    %887 = vmatpush1.msra.mxu0 0.0
    %888 = vmatprep.subr.mxu0 0.0
    %889 = vmatpush1.msra.mxu0 0.0
    %890 = vmatprep.subr.mxu0 0.0
    %891 = vmatpush1.msra.mxu0 0.0
    %892 = vmatprep.subr.mxu0 0.0
    %893 = vmatpush1.msra.mxu0 0.0
    %894 = vmatprep.subr.mxu0 0.0
    %895 = vmatpush1.msra.mxu0 %v484
    %896 = vmatprep.subr.mxu0 0.0
    %897 = vmatpush1.msra.mxu0 %v479
    %898 = vmatprep.subr.mxu0 0.0
    %899 = vmatpush2.msra.mxu0 0.0
    %900 = vmatprep.subr.mxu0 0.0
    %901 = vmatpush2.msra.mxu0 0.0
    %902 = vmatprep.subr.mxu0 0.0
    %903 = vmatpush2.msra.mxu0 0.0
    %904 = vmatprep.subr.mxu0 0.0
    %905 = vmatpush2.msra.mxu0 0.0
    %906 = vmatprep.subr.mxu0 0.0
    %907 = vmatpush2.msra.mxu0 0.0
    %908 = vmatprep.subr.mxu0 0.0
    %909 = vmatpush2.msra.mxu0 0.0
    %910 = vmatprep.subr.mxu0 0.0
    %911 = vmatpush2.msra.mxu0 0.0
    %912 = vmatprep.subr.mxu0 0.0
    %913 = vmatpush2.msra.mxu0 0.0
    %914 = vmatprep.subr.mxu0 0.0
    %915 = vmatpush2.msra.mxu0 0.0
    %916 = vmatprep.subr.mxu0 0.0
    %917 = vmatpush2.msra.mxu0 0.0
    %918 = vmatprep.subr.mxu0 0.0
    %919 = vmatpush2.msra.mxu0 0.0
    %920 = vmatprep.subr.mxu0 0.0
    %921 = vmatpush2.msra.mxu0 0.0
    %922 = vmatprep.subr.mxu0 0.0
    %923 = vmatpush2.msra.mxu0 0.0
    %924 = vmatprep.subr.mxu0 0.0
    %925 = vmatpush2.msra.mxu0 0.0
    %926 = vmatprep.subr.mxu0 0.0
    %927 = vmatpush2.msra.mxu0 0.0
    %928 = vmatprep.subr.mxu0 0.0
    %929 = vmatpush2.msra.mxu0 0.0
    %930 = vmatprep.mubr.f32.mxu0 0.0
    %931 = vmatmul.mubr.f32.gmra.mxu0 %v861
    %v932 = vpop.f32.mrf.mxu0
    %v933 = vadd.f32 0.0, %v932
    %v934 = vpop.f32.mrf.mxu0
    %935 = vmatprep.mubr.f32.mxu0 0.0
    %936 = vmatmul.mubr.f32.gmra.mxu0 %v864
    %v937 = vpop.f32.mrf.mxu0
    %v938 = vadd.f32 0.0, %v937
    %v939 = vpop.f32.mrf.mxu0
    %940 = vdwg.mxu0
    %v942 = vsel %vm377, %v775, 0
    %v945 = vsel %vm377, %v776, 0
    %947 = vmatprep.subr.mxu0 0.0
    %948 = vmatpush1.msra.mxu0 0.0
    %949 = vmatprep.subr.mxu0 0.0
    %950 = vmatpush1.msra.mxu0 0.0
    %951 = vmatprep.subr.mxu0 0.0
    %952 = vmatpush1.msra.mxu0 0.0
    %953 = vmatprep.subr.mxu0 0.0
    %954 = vmatpush1.msra.mxu0 0.0
    %955 = vmatprep.subr.mxu0 0.0
    %956 = vmatpush1.msra.mxu0 0.0
    %957 = vmatprep.subr.mxu0 0.0
    %958 = vmatpush1.msra.mxu0 0.0
    %959 = vmatprep.subr.mxu0 0.0
    %960 = vmatpush1.msra.mxu0 0.0
    %961 = vmatprep.subr.mxu0 0.0
    %962 = vmatpush1.msra.mxu0 0.0
    %963 = vmatprep.subr.mxu0 0.0
    %964 = vmatpush1.msra.mxu0 0.0
    %965 = vmatprep.subr.mxu0 0.0
    %966 = vmatpush1.msra.mxu0 0.0
    %967 = vmatprep.subr.mxu0 0.0
    %968 = vmatpush1.msra.mxu0 0.0
    %969 = vmatprep.subr.mxu0 0.0
    %970 = vmatpush1.msra.mxu0 0.0
    %971 = vmatprep.subr.mxu0 0.0
    %972 = vmatpush1.msra.mxu0 0.0
    %973 = vmatprep.subr.mxu0 0.0
    %974 = vmatpush1.msra.mxu0 0.0
    %975 = vmatprep.subr.mxu0 0.0
    %976 = vmatpush1.msra.mxu0 %v494
    %977 = vmatprep.subr.mxu0 0.0
    %978 = vmatpush1.msra.mxu0 %v489
    %979 = vmatprep.subr.mxu0 0.0
    %980 = vmatpush2.msra.mxu0 0.0
    %981 = vmatprep.subr.mxu0 0.0
    %982 = vmatpush2.msra.mxu0 0.0
    %983 = vmatprep.subr.mxu0 0.0
    %984 = vmatpush2.msra.mxu0 0.0
    %985 = vmatprep.subr.mxu0 0.0
    %986 = vmatpush2.msra.mxu0 0.0
    %987 = vmatprep.subr.mxu0 0.0
    %988 = vmatpush2.msra.mxu0 0.0
    %989 = vmatprep.subr.mxu0 0.0
    %990 = vmatpush2.msra.mxu0 0.0
    %991 = vmatprep.subr.mxu0 0.0
    %992 = vmatpush2.msra.mxu0 0.0
    %993 = vmatprep.subr.mxu0 0.0
    %994 = vmatpush2.msra.mxu0 0.0
    %995 = vmatprep.subr.mxu0 0.0
    %996 = vmatpush2.msra.mxu0 0.0
    %997 = vmatprep.subr.mxu0 0.0
    %998 = vmatpush2.msra.mxu0 0.0
    %999 = vmatprep.subr.mxu0 0.0
    %1000 = vmatpush2.msra.mxu0 0.0
    %1001 = vmatprep.subr.mxu0 0.0
    %1002 = vmatpush2.msra.mxu0 0.0
    %1003 = vmatprep.subr.mxu0 0.0
    %1004 = vmatpush2.msra.mxu0 0.0
    %1005 = vmatprep.subr.mxu0 0.0
    %1006 = vmatpush2.msra.mxu0 0.0
    %1007 = vmatprep.subr.mxu0 0.0
    %1008 = vmatpush2.msra.mxu0 0.0
    %1009 = vmatprep.subr.mxu0 0.0
    %1010 = vmatpush2.msra.mxu0 0.0
    %1011 = vmatprep.mubr.f32.mxu0 0.0
    %1012 = vmatmul.mubr.f32.gmra.mxu0 %v942
    %v1013 = vpop.f32.mrf.mxu0
    %v1014 = vadd.f32 0.0, %v1013
    %v1015 = vpop.f32.mrf.mxu0
    %1016 = vmatprep.mubr.f32.mxu0 0.0
    %1017 = vmatmul.mubr.f32.gmra.mxu0 %v945
    %v1018 = vpop.f32.mrf.mxu0
    %v1019 = vadd.f32 0.0, %v1018
    %v1020 = vpop.f32.mrf.mxu0
    %1021 = vdwg.mxu0
    %v1023 = vsel %vm377, %v777, 0
    %v1026 = vsel %vm377, %v778, 0
    %1028 = vmatprep.subr.mxu0 0.0
    %1029 = vmatpush1.msra.mxu0 0.0
    %1030 = vmatprep.subr.mxu0 0.0
    %1031 = vmatpush1.msra.mxu0 0.0
    %1032 = vmatprep.subr.mxu0 0.0
    %1033 = vmatpush1.msra.mxu0 0.0
    %1034 = vmatprep.subr.mxu0 0.0
    %1035 = vmatpush1.msra.mxu0 0.0
    %1036 = vmatprep.subr.mxu0 0.0
    %1037 = vmatpush1.msra.mxu0 0.0
    %1038 = vmatprep.subr.mxu0 0.0
    %1039 = vmatpush1.msra.mxu0 0.0
    %1040 = vmatprep.subr.mxu0 0.0
    %1041 = vmatpush1.msra.mxu0 0.0
    %1042 = vmatprep.subr.mxu0 0.0
    %1043 = vmatpush1.msra.mxu0 0.0
    %1044 = vmatprep.subr.mxu0 0.0
    %1045 = vmatpush1.msra.mxu0 0.0
    %1046 = vmatprep.subr.mxu0 0.0
    %1047 = vmatpush1.msra.mxu0 0.0
    %1048 = vmatprep.subr.mxu0 0.0
    %1049 = vmatpush1.msra.mxu0 0.0
    %1050 = vmatprep.subr.mxu0 0.0
    %1051 = vmatpush1.msra.mxu0 0.0
    %1052 = vmatprep.subr.mxu0 0.0
    %1053 = vmatpush1.msra.mxu0 0.0
    %1054 = vmatprep.subr.mxu0 0.0
    %1055 = vmatpush1.msra.mxu0 0.0
    %1056 = vmatprep.subr.mxu0 0.0
    %1057 = vmatpush1.msra.mxu0 %v504
    %1058 = vmatprep.subr.mxu0 0.0
    %1059 = vmatpush1.msra.mxu0 %v499
    %1060 = vmatprep.subr.mxu0 0.0
    %1061 = vmatpush2.msra.mxu0 0.0
    %1062 = vmatprep.subr.mxu0 0.0
    %1063 = vmatpush2.msra.mxu0 0.0
    %1064 = vmatprep.subr.mxu0 0.0
    %1065 = vmatpush2.msra.mxu0 0.0
    %1066 = vmatprep.subr.mxu0 0.0
    %1067 = vmatpush2.msra.mxu0 0.0
    %1068 = vmatprep.subr.mxu0 0.0
    %1069 = vmatpush2.msra.mxu0 0.0
    %1070 = vmatprep.subr.mxu0 0.0
    %1071 = vmatpush2.msra.mxu0 0.0
    %1072 = vmatprep.subr.mxu0 0.0
    %1073 = vmatpush2.msra.mxu0 0.0
    %1074 = vmatprep.subr.mxu0 0.0
    %1075 = vmatpush2.msra.mxu0 0.0
    %1076 = vmatprep.subr.mxu0 0.0
    %1077 = vmatpush2.msra.mxu0 0.0
    %1078 = vmatprep.subr.mxu0 0.0
    %1079 = vmatpush2.msra.mxu0 0.0
    %1080 = vmatprep.subr.mxu0 0.0
    %1081 = vmatpush2.msra.mxu0 0.0
    %1082 = vmatprep.subr.mxu0 0.0
    %1083 = vmatpush2.msra.mxu0 0.0
    %1084 = vmatprep.subr.mxu0 0.0
    %1085 = vmatpush2.msra.mxu0 0.0
    %1086 = vmatprep.subr.mxu0 0.0
    %1087 = vmatpush2.msra.mxu0 0.0
    %1088 = vmatprep.subr.mxu0 0.0
    %1089 = vmatpush2.msra.mxu0 0.0
    %1090 = vmatprep.subr.mxu0 0.0
    %1091 = vmatpush2.msra.mxu0 0.0
    %1092 = vmatprep.mubr.f32.mxu0 0.0
    %1093 = vmatmul.mubr.f32.gmra.mxu0 %v1023
    %v1094 = vpop.f32.mrf.mxu0
    %v1095 = vadd.f32 0.0, %v1094
    %v1096 = vpop.f32.mrf.mxu0
    %1097 = vmatprep.mubr.f32.mxu0 0.0
    %1098 = vmatmul.mubr.f32.gmra.mxu0 %v1026
    %v1099 = vpop.f32.mrf.mxu0
    %v1100 = vadd.f32 0.0, %v1099
    %v1101 = vpop.f32.mrf.mxu0
    %1102 = vdwg.mxu0
    %v1103 = vmax.f32 %v852, 0.0
    %v1104 = vmax.f32 %v857, 0.0
    %v1105 = vmax.f32 %v933, 0.0
    %v1106 = vmax.f32 %v938, 0.0
    %v1107 = vmax.f32 %v1014, 0.0
    %v1108 = vmax.f32 %v1019, 0.0
    %v1109 = vmax.f32 %v1095, 0.0
    %v1110 = vmax.f32 %v1100, 0.0
    %v1111 = vld [vmem:[#allocation5 + $0x30] sm:$0xff]
    %v1112 = vld [vmem:[#allocation5 + $0x38] sm:$0xff]
    %v1114 = vsel %vm377, %v1103, 0
    %v1117 = vsel %vm377, %v1104, 0
    %v1120 = vsel %vm377, %v1105, 0
    %v1123 = vsel %vm377, %v1106, 0
    %v1126 = vsel %vm377, %v1107, 0
    %v1129 = vsel %vm377, %v1108, 0
    %v1132 = vsel %vm377, %v1109, 0
    %v1135 = vsel %vm377, %v1110, 0
    %1137 = vmatprep.subr.mxu0 0.0
    %1138 = vmatpush1.msra.mxu0 0.0
    %1139 = vmatprep.subr.mxu0 0.0
    %1140 = vmatpush1.msra.mxu0 0.0
    %1141 = vmatprep.subr.mxu0 0.0
    %1142 = vmatpush1.msra.mxu0 0.0
    %1143 = vmatprep.subr.mxu0 0.0
    %1144 = vmatpush1.msra.mxu0 0.0
    %1145 = vmatprep.subr.mxu0 0.0
    %1146 = vmatpush1.msra.mxu0 0.0
    %1147 = vmatprep.subr.mxu0 0.0
    %1148 = vmatpush1.msra.mxu0 0.0
    %1149 = vmatprep.subr.mxu0 0.0
    %1150 = vmatpush1.msra.mxu0 0.0
    %1151 = vmatprep.subr.mxu0 0.0
    %1152 = vmatpush1.msra.mxu0 0.0
    %1153 = vmatprep.subr.mxu0 0.0
    %1154 = vmatpush1.msra.mxu0 0.0
    %1155 = vmatprep.subr.mxu0 0.0
    %1156 = vmatpush1.msra.mxu0 0.0
    %1157 = vmatprep.subr.mxu0 0.0
    %1158 = vmatpush1.msra.mxu0 0.0
    %1159 = vmatprep.subr.mxu0 0.0
    %1160 = vmatpush1.msra.mxu0 0.0
    %1161 = vmatprep.subr.mxu0 0.0
    %1162 = vmatpush1.msra.mxu0 0.0
    %1163 = vmatprep.subr.mxu0 0.0
    %1164 = vmatpush1.msra.mxu0 0.0
    %1165 = vmatprep.subr.mxu0 0.0
    %1166 = vmatpush1.msra.mxu0 %v1112
    %1167 = vmatprep.subr.mxu0 0.0
    %1168 = vmatpush1.msra.mxu0 %v1111
    %1169 = vmatprep.subr.mxu0 0.0
    %1170 = vmatpush2.msra.mxu0 0.0
    %1171 = vmatprep.subr.mxu0 0.0
    %1172 = vmatpush2.msra.mxu0 0.0
    %1173 = vmatprep.subr.mxu0 0.0
    %1174 = vmatpush2.msra.mxu0 0.0
    %1175 = vmatprep.subr.mxu0 0.0
    %1176 = vmatpush2.msra.mxu0 0.0
    %1177 = vmatprep.subr.mxu0 0.0
    %1178 = vmatpush2.msra.mxu0 0.0
    %1179 = vmatprep.subr.mxu0 0.0
    %1180 = vmatpush2.msra.mxu0 0.0
    %1181 = vmatprep.subr.mxu0 0.0
    %1182 = vmatpush2.msra.mxu0 0.0
    %1183 = vmatprep.subr.mxu0 0.0
    %1184 = vmatpush2.msra.mxu0 0.0
    %1185 = vmatprep.subr.mxu0 0.0
    %1186 = vmatpush2.msra.mxu0 0.0
    %1187 = vmatprep.subr.mxu0 0.0
    %1188 = vmatpush2.msra.mxu0 0.0
    %1189 = vmatprep.subr.mxu0 0.0
    %1190 = vmatpush2.msra.mxu0 0.0
    %1191 = vmatprep.subr.mxu0 0.0
    %1192 = vmatpush2.msra.mxu0 0.0
    %1193 = vmatprep.subr.mxu0 0.0
    %1194 = vmatpush2.msra.mxu0 0.0
    %1195 = vmatprep.subr.mxu0 0.0
    %1196 = vmatpush2.msra.mxu0 0.0
    %1197 = vmatprep.subr.mxu0 0.0
    %1198 = vmatpush2.msra.mxu0 0.0
    %1199 = vmatprep.subr.mxu0 0.0
    %1200 = vmatpush2.msra.mxu0 0.0
    %1201 = vmatprep.mubr.f32.mxu0 0.0
    %1202 = vmatmul.mubr.f32.gmra.mxu0 %v1114
    %v1203 = vpop.f32.mrf.mxu0
    %v1204 = vadd.f32 0.0, %v1203
    %v1205 = vpop.f32.mrf.mxu0
    %1206 = vmatprep.mubr.f32.mxu0 0.0
    %1207 = vmatmul.mubr.f32.gmra.mxu0 %v1117
    %v1208 = vpop.f32.mrf.mxu0
    %v1209 = vadd.f32 0.0, %v1208
    %v1210 = vpop.f32.mrf.mxu0
    %1211 = vmatprep.mubr.f32.mxu0 0.0
    %1212 = vmatmul.mubr.f32.gmra.mxu0 %v1120
    %v1213 = vpop.f32.mrf.mxu0
    %v1214 = vadd.f32 0.0, %v1213
    %v1215 = vpop.f32.mrf.mxu0
    %1216 = vmatprep.mubr.f32.mxu0 0.0
    %1217 = vmatmul.mubr.f32.gmra.mxu0 %v1123
    %v1218 = vpop.f32.mrf.mxu0
    %v1219 = vadd.f32 0.0, %v1218
    %v1220 = vpop.f32.mrf.mxu0
    %1221 = vmatprep.mubr.f32.mxu0 0.0
    %1222 = vmatmul.mubr.f32.gmra.mxu0 %v1126
    %v1223 = vpop.f32.mrf.mxu0
    %v1224 = vadd.f32 0.0, %v1223
    %v1225 = vpop.f32.mrf.mxu0
    %1226 = vmatprep.mubr.f32.mxu0 0.0
    %1227 = vmatmul.mubr.f32.gmra.mxu0 %v1129
    %v1228 = vpop.f32.mrf.mxu0
    %v1229 = vadd.f32 0.0, %v1228
    %v1230 = vpop.f32.mrf.mxu0
    %1231 = vmatprep.mubr.f32.mxu0 0.0
    %1232 = vmatmul.mubr.f32.gmra.mxu0 %v1132
    %v1233 = vpop.f32.mrf.mxu0
    %v1234 = vadd.f32 0.0, %v1233
    %v1235 = vpop.f32.mrf.mxu0
    %1236 = vmatprep.mubr.f32.mxu0 0.0
    %1237 = vmatmul.mubr.f32.gmra.mxu0 %v1135
    %v1238 = vpop.f32.mrf.mxu0
    %v1239 = vadd.f32 0.0, %v1238
    %v1240 = vpop.f32.mrf.mxu0
    %1241 = vdwg.mxu0
    %1250 = vrot.lane.b32.xlu0 %v1204, 112
    %v1251 = vpop.permute.xlu0 %1250
    %1252 = vrot.lane.b32.xlu0 %v1209, 112
    %v1253 = vpop.permute.xlu0 %1252
    %1254 = vrot.lane.b32.xlu0 %v1214, 112
    %v1255 = vpop.permute.xlu0 %1254
    %1256 = vrot.lane.b32.xlu0 %v1219, 112
    %v1257 = vpop.permute.xlu0 %1256
    %1258 = vrot.lane.b32.xlu0 %v1224, 112
    %v1259 = vpop.permute.xlu0 %1258
    %1260 = vrot.lane.b32.xlu0 %v1229, 112
    %v1261 = vpop.permute.xlu0 %1260
    %1262 = vrot.lane.b32.xlu0 %v1234, 112
    %v1263 = vpop.permute.xlu0 %1262
    %1264 = vrot.lane.b32.xlu0 %v1239, 112
    %v1265 = vpop.permute.xlu0 %1264
    %1274 = vxpose.xlu0.b32.start [1/16] %v1251, 128
    %1275 = vxpose.xlu0.b32.cont [2/16] %v1253, 128
    %1276 = vxpose.xlu0.b32.cont [3/16] 0.0, 128
    %1277 = vxpose.xlu0.b32.cont [4/16] 0.0, 128
    %1278 = vxpose.xlu0.b32.cont [5/16] 0.0, 128
    %1279 = vxpose.xlu0.b32.cont [6/16] 0.0, 128
    %1280 = vxpose.xlu0.b32.cont [7/16] 0.0, 128
    %1281 = vxpose.xlu0.b32.cont [8/16] 0.0, 128
    %1282 = vxpose.xlu0.b32.cont [9/16] 0.0, 128
    %1283 = vxpose.xlu0.b32.cont [10/16] 0.0, 128
    %1284 = vxpose.xlu0.b32.cont [11/16] 0.0, 128
    %1285 = vxpose.xlu0.b32.cont [12/16] 0.0, 128
    %1286 = vxpose.xlu0.b32.cont [13/16] 0.0, 128
    %1287 = vxpose.xlu0.b32.cont [14/16] 0.0, 128
    %1288 = vxpose.xlu0.b32.cont [15/16] 0.0, 128
    %1289 = vxpose.xlu0.b32.end [16/16] 0.0, 128
    %v1290 = vpop.trf.xlu0
    %v1291 = vpop.trf.xlu0
    %v1292 = vpop.trf.xlu0
    %v1293 = vpop.trf.xlu0
    %v1294 = vpop.trf.xlu0
    %v1295 = vpop.trf.xlu0
    %v1296 = vpop.trf.xlu0
    %v1297 = vpop.trf.xlu0
    %v1298 = vpop.trf.xlu0
    %v1299 = vpop.trf.xlu0
    %v1300 = vpop.trf.xlu0
    %v1301 = vpop.trf.xlu0
    %v1302 = vpop.trf.xlu0
    %v1303 = vpop.trf.xlu0
    %v1304 = vpop.trf.xlu0
    %v1305 = vpop.trf.xlu0
    %1306 = vxpose.xlu0.b32.start [1/16] %v1255, 128
    %1307 = vxpose.xlu0.b32.cont [2/16] %v1257, 128
    %1308 = vxpose.xlu0.b32.cont [3/16] 0.0, 128
    %1309 = vxpose.xlu0.b32.cont [4/16] 0.0, 128
    %1310 = vxpose.xlu0.b32.cont [5/16] 0.0, 128
    %1311 = vxpose.xlu0.b32.cont [6/16] 0.0, 128
    %1312 = vxpose.xlu0.b32.cont [7/16] 0.0, 128
    %1313 = vxpose.xlu0.b32.cont [8/16] 0.0, 128
    %1314 = vxpose.xlu0.b32.cont [9/16] 0.0, 128
    %1315 = vxpose.xlu0.b32.cont [10/16] 0.0, 128
    %1316 = vxpose.xlu0.b32.cont [11/16] 0.0, 128
    %1317 = vxpose.xlu0.b32.cont [12/16] 0.0, 128
    %1318 = vxpose.xlu0.b32.cont [13/16] 0.0, 128
    %1319 = vxpose.xlu0.b32.cont [14/16] 0.0, 128
    %1320 = vxpose.xlu0.b32.cont [15/16] 0.0, 128
    %1321 = vxpose.xlu0.b32.end [16/16] 0.0, 128
    %v1322 = vpop.trf.xlu0
    %v1323 = vpop.trf.xlu0
    %v1324 = vpop.trf.xlu0
    %v1325 = vpop.trf.xlu0
    %v1326 = vpop.trf.xlu0
    %v1327 = vpop.trf.xlu0
    %v1328 = vpop.trf.xlu0
    %v1329 = vpop.trf.xlu0
    %v1330 = vpop.trf.xlu0
    %v1331 = vpop.trf.xlu0
    %v1332 = vpop.trf.xlu0
    %v1333 = vpop.trf.xlu0
    %v1334 = vpop.trf.xlu0
    %v1335 = vpop.trf.xlu0
    %v1336 = vpop.trf.xlu0
    %v1337 = vpop.trf.xlu0
    %1338 = vxpose.xlu0.b32.start [1/16] %v1259, 128
    %1339 = vxpose.xlu0.b32.cont [2/16] %v1261, 128
    %1340 = vxpose.xlu0.b32.cont [3/16] 0.0, 128
    %1341 = vxpose.xlu0.b32.cont [4/16] 0.0, 128
    %1342 = vxpose.xlu0.b32.cont [5/16] 0.0, 128
    %1343 = vxpose.xlu0.b32.cont [6/16] 0.0, 128
    %1344 = vxpose.xlu0.b32.cont [7/16] 0.0, 128
    %1345 = vxpose.xlu0.b32.cont [8/16] 0.0, 128
    %1346 = vxpose.xlu0.b32.cont [9/16] 0.0, 128
    %1347 = vxpose.xlu0.b32.cont [10/16] 0.0, 128
    %1348 = vxpose.xlu0.b32.cont [11/16] 0.0, 128
    %1349 = vxpose.xlu0.b32.cont [12/16] 0.0, 128
    %1350 = vxpose.xlu0.b32.cont [13/16] 0.0, 128
    %1351 = vxpose.xlu0.b32.cont [14/16] 0.0, 128
    %1352 = vxpose.xlu0.b32.cont [15/16] 0.0, 128
    %1353 = vxpose.xlu0.b32.end [16/16] 0.0, 128
    %v1354 = vpop.trf.xlu0
    %v1355 = vpop.trf.xlu0
    %v1356 = vpop.trf.xlu0
    %v1357 = vpop.trf.xlu0
    %v1358 = vpop.trf.xlu0
    %v1359 = vpop.trf.xlu0
    %v1360 = vpop.trf.xlu0
    %v1361 = vpop.trf.xlu0
    %v1362 = vpop.trf.xlu0
    %v1363 = vpop.trf.xlu0
    %v1364 = vpop.trf.xlu0
    %v1365 = vpop.trf.xlu0
    %v1366 = vpop.trf.xlu0
    %v1367 = vpop.trf.xlu0
    %v1368 = vpop.trf.xlu0
    %v1369 = vpop.trf.xlu0
    %1370 = vxpose.xlu0.b32.start [1/16] %v1263, 128
    %1371 = vxpose.xlu0.b32.cont [2/16] %v1265, 128
    %1372 = vxpose.xlu0.b32.cont [3/16] 0.0, 128
    %1373 = vxpose.xlu0.b32.cont [4/16] 0.0, 128
    %1374 = vxpose.xlu0.b32.cont [5/16] 0.0, 128
    %1375 = vxpose.xlu0.b32.cont [6/16] 0.0, 128
    %1376 = vxpose.xlu0.b32.cont [7/16] 0.0, 128
    %1377 = vxpose.xlu0.b32.cont [8/16] 0.0, 128
    %1378 = vxpose.xlu0.b32.cont [9/16] 0.0, 128
    %1379 = vxpose.xlu0.b32.cont [10/16] 0.0, 128
    %1380 = vxpose.xlu0.b32.cont [11/16] 0.0, 128
    %1381 = vxpose.xlu0.b32.cont [12/16] 0.0, 128
    %1382 = vxpose.xlu0.b32.cont [13/16] 0.0, 128
    %1383 = vxpose.xlu0.b32.cont [14/16] 0.0, 128
    %1384 = vxpose.xlu0.b32.cont [15/16] 0.0, 128
    %1385 = vxpose.xlu0.b32.end [16/16] 0.0, 128
    %v1386 = vpop.trf.xlu0
    %v1387 = vpop.trf.xlu0
    %v1388 = vpop.trf.xlu0
    %v1389 = vpop.trf.xlu0
    %v1390 = vpop.trf.xlu0
    %v1391 = vpop.trf.xlu0
    %v1392 = vpop.trf.xlu0
    %v1393 = vpop.trf.xlu0
    %v1394 = vpop.trf.xlu0
    %v1395 = vpop.trf.xlu0
    %v1396 = vpop.trf.xlu0
    %v1397 = vpop.trf.xlu0
    %v1398 = vpop.trf.xlu0
    %v1399 = vpop.trf.xlu0
    %v1400 = vpop.trf.xlu0
    %v1401 = vpop.trf.xlu0
    %1402 = vset.pattern.permute.xlu0 17
    %1403 = vperm.xlu0 %1402, %v1204
    %v1404 = vpop.permute.xlu0 %1403
    %1406 = vset.pattern.permute.xlu0 17
    %1407 = vperm.xlu0 %1406, %v1209
    %v1408 = vpop.permute.xlu0 %1407
    %1410 = vset.pattern.permute.xlu0 17
    %1411 = vperm.xlu0 %1410, %v1214
    %v1412 = vpop.permute.xlu0 %1411
    %1414 = vset.pattern.permute.xlu0 17
    %1415 = vperm.xlu0 %1414, %v1219
    %v1416 = vpop.permute.xlu0 %1415
    %1418 = vset.pattern.permute.xlu0 17
    %1419 = vperm.xlu0 %1418, %v1224
    %v1420 = vpop.permute.xlu0 %1419
    %1422 = vset.pattern.permute.xlu0 17
    %1423 = vperm.xlu0 %1422, %v1229
    %v1424 = vpop.permute.xlu0 %1423
    %1426 = vset.pattern.permute.xlu0 17
    %1427 = vperm.xlu0 %1426, %v1234
    %v1428 = vpop.permute.xlu0 %1427
    %1430 = vset.pattern.permute.xlu0 17
    %1431 = vperm.xlu0 %1430, %v1239
    %v1432 = vpop.permute.xlu0 %1431
    %v1434 = vlaneseq
    %v1435 = vshrl.u32 %v1434, 7
    %v1436 = vsub.s32 0, %v1435
    %v1437 = vrot.slane %v1290, %v1436
    %v1438 = vlaneseq
    %v1439 = vshrl.u32 %v1438, 7
    %v1440 = vsub.s32 0, %v1439
    %v1441 = vrot.slane %v1322, %v1440
    %v1442 = vlaneseq
    %v1443 = vshrl.u32 %v1442, 7
    %v1444 = vsub.s32 0, %v1443
    %v1445 = vrot.slane %v1354, %v1444
    %v1446 = vlaneseq
    %v1447 = vshrl.u32 %v1446, 7
    %v1448 = vsub.s32 0, %v1447
    %v1449 = vrot.slane %v1386, %v1448
    %v1450 = vadd.f32 %v1404, %v1437
    %v1451 = vadd.f32 %v1408, %v1437
    %v1452 = vadd.f32 %v1412, %v1441
    %v1453 = vadd.f32 %v1416, %v1441
    %v1454 = vadd.f32 %v1420, %v1445
    %v1455 = vadd.f32 %v1424, %v1445
    %v1456 = vadd.f32 %v1428, %v1449
    %v1457 = vadd.f32 %v1432, %v1449
    %vm1458 = vcmp.gt.f32.partialorder %v1450, 0.0
    %vm1459 = vcmp.gt.f32.partialorder %v1451, 0.0
    %vm1460 = vcmp.gt.f32.partialorder %v1452, 0.0
    %vm1461 = vcmp.gt.f32.partialorder %v1453, 0.0
    %vm1462 = vcmp.gt.f32.partialorder %v1454, 0.0
    %vm1463 = vcmp.gt.f32.partialorder %v1455, 0.0
    %vm1464 = vcmp.gt.f32.partialorder %v1456, 0.0
    %vm1465 = vcmp.gt.f32.partialorder %v1457, 0.0
    %v1466 = vmin.f32 %v1450, 0.0
    %v1467 = vmin.f32 %v1451, 0.0
    %v1468 = vmin.f32 %v1452, 0.0
    %v1469 = vmin.f32 %v1453, 0.0
    %v1470 = vmin.f32 %v1454, 0.0
    %v1471 = vmin.f32 %v1455, 0.0
    %v1472 = vmin.f32 %v1456, 0.0
    %v1473 = vmin.f32 %v1457, 0.0
    %v1474 = vmul.f32 %v1466, 1.442695
    %v1475 = vpow.pop %v1474
    %v1476 = vmul.f32 %v1467, 1.442695
    %v1477 = vpow.pop %v1476
    %v1478 = vmul.f32 %v1468, 1.442695
    %v1479 = vpow.pop %v1478
    %v1480 = vmul.f32 %v1469, 1.442695
    %v1481 = vpow.pop %v1480
    %v1482 = vmul.f32 %v1470, 1.442695
    %v1483 = vpow.pop %v1482
    %v1484 = vmul.f32 %v1471, 1.442695
    %v1485 = vpow.pop %v1484
    %v1486 = vmul.f32 %v1472, 1.442695
    %v1487 = vpow.pop %v1486
    %v1488 = vmul.f32 %v1473, 1.442695
    %v1489 = vpow.pop %v1488
    %v1490 = vsub.f32 %v1475, 1.0
    %v1491 = vsub.f32 %v1477, 1.0
    %v1492 = vsub.f32 %v1479, 1.0
    %v1493 = vsub.f32 %v1481, 1.0
    %v1494 = vsub.f32 %v1483, 1.0
    %v1495 = vsub.f32 %v1485, 1.0
    %v1496 = vsub.f32 %v1487, 1.0
    %v1497 = vsub.f32 %v1489, 1.0
    %v1498 = vsel %vm1458, %v1450, %v1490
    %v1499 = vsel %vm1459, %v1451, %v1491
    %v1500 = vsel %vm1460, %v1452, %v1492
    %v1501 = vsel %vm1461, %v1453, %v1493
    %v1502 = vsel %vm1462, %v1454, %v1494
    %v1503 = vsel %vm1463, %v1455, %v1495
    %v1504 = vsel %vm1464, %v1456, %v1496
    %v1505 = vsel %vm1465, %v1457, %v1497
    %v1506 = vmul.f32 %v60, %v1498
    %v1507 = vmul.f32 %v61, %v1499
    %v1508 = vmul.f32 %v62, %v1500
    %v1509 = vmul.f32 %v63, %v1501
    %v1510 = vmul.f32 %v64, %v1502
    %v1511 = vmul.f32 %v65, %v1503
    %v1512 = vmul.f32 %v66, %v1504
    %v1513 = vmul.f32 %v67, %v1505
    %v1515 = vsel %vm377, %v1506, 0
    %v1518 = vsel %vm377, %v1507, 0
    %1520 = vmatprep.subr.mxu0 0.0
    %1521 = vmatpush1.msra.mxu0 0.0
    %1522 = vmatprep.subr.mxu0 0.0
    %1523 = vmatpush1.msra.mxu0 0.0
    %1524 = vmatprep.subr.mxu0 0.0
    %1525 = vmatpush1.msra.mxu0 0.0
    %1526 = vmatprep.subr.mxu0 0.0
    %1527 = vmatpush1.msra.mxu0 0.0
    %1528 = vmatprep.subr.mxu0 0.0
    %1529 = vmatpush1.msra.mxu0 0.0
    %1530 = vmatprep.subr.mxu0 0.0
    %1531 = vmatpush1.msra.mxu0 0.0
    %1532 = vmatprep.subr.mxu0 0.0
    %1533 = vmatpush1.msra.mxu0 0.0
    %1534 = vmatprep.subr.mxu0 0.0
    %1535 = vmatpush1.msra.mxu0 0.0
    %1536 = vmatprep.subr.mxu0 0.0
    %1537 = vmatpush1.msra.mxu0 0.0
    %1538 = vmatprep.subr.mxu0 0.0
    %1539 = vmatpush1.msra.mxu0 0.0
    %1540 = vmatprep.subr.mxu0 0.0
    %1541 = vmatpush1.msra.mxu0 0.0
    %1542 = vmatprep.subr.mxu0 0.0
    %1543 = vmatpush1.msra.mxu0 0.0
    %1544 = vmatprep.subr.mxu0 0.0
    %1545 = vmatpush1.msra.mxu0 0.0
    %1546 = vmatprep.subr.mxu0 0.0
    %1547 = vmatpush1.msra.mxu0 0.0
    %1548 = vmatprep.subr.mxu0 0.0
    %1549 = vmatpush1.msra.mxu0 %v1209
    %1550 = vmatprep.subr.mxu0 0.0
    %1551 = vmatpush1.msra.mxu0 %v1204
    %1552 = vmatprep.subr.mxu0 0.0
    %1553 = vmatpush2.msra.mxu0 0.0
    %1554 = vmatprep.subr.mxu0 0.0
    %1555 = vmatpush2.msra.mxu0 0.0
    %1556 = vmatprep.subr.mxu0 0.0
    %1557 = vmatpush2.msra.mxu0 0.0
    %1558 = vmatprep.subr.mxu0 0.0
    %1559 = vmatpush2.msra.mxu0 0.0
    %1560 = vmatprep.subr.mxu0 0.0
    %1561 = vmatpush2.msra.mxu0 0.0
    %1562 = vmatprep.subr.mxu0 0.0
    %1563 = vmatpush2.msra.mxu0 0.0
    %1564 = vmatprep.subr.mxu0 0.0
    %1565 = vmatpush2.msra.mxu0 0.0
    %1566 = vmatprep.subr.mxu0 0.0
    %1567 = vmatpush2.msra.mxu0 0.0
    %1568 = vmatprep.subr.mxu0 0.0
    %1569 = vmatpush2.msra.mxu0 0.0
    %1570 = vmatprep.subr.mxu0 0.0
    %1571 = vmatpush2.msra.mxu0 0.0
    %1572 = vmatprep.subr.mxu0 0.0
    %1573 = vmatpush2.msra.mxu0 0.0
    %1574 = vmatprep.subr.mxu0 0.0
    %1575 = vmatpush2.msra.mxu0 0.0
    %1576 = vmatprep.subr.mxu0 0.0
    %1577 = vmatpush2.msra.mxu0 0.0
    %1578 = vmatprep.subr.mxu0 0.0
    %1579 = vmatpush2.msra.mxu0 0.0
    %1580 = vmatprep.subr.mxu0 0.0
    %1581 = vmatpush2.msra.mxu0 0.0
    %1582 = vmatprep.subr.mxu0 0.0
    %1583 = vmatpush2.msra.mxu0 0.0
    %1584 = vmatprep.mubr.f32.mxu0 0.0
    %1585 = vmatmul.mubr.f32.gmra.mxu0 %v1515
    %v1586 = vpop.f32.mrf.mxu0
    %v1587 = vadd.f32 0.0, %v1586
    %v1588 = vpop.f32.mrf.mxu0
    %1589 = vmatprep.mubr.f32.mxu0 0.0
    %1590 = vmatmul.mubr.f32.gmra.mxu0 %v1518
    %v1591 = vpop.f32.mrf.mxu0
    %v1592 = vadd.f32 0.0, %v1591
    %v1593 = vpop.f32.mrf.mxu0
    %1594 = vdwg.mxu0
    %v1596 = vsel %vm377, %v1508, 0
    %v1599 = vsel %vm377, %v1509, 0
    %1601 = vmatprep.subr.mxu0 0.0
    %1602 = vmatpush1.msra.mxu0 0.0
    %1603 = vmatprep.subr.mxu0 0.0
    %1604 = vmatpush1.msra.mxu0 0.0
    %1605 = vmatprep.subr.mxu0 0.0
    %1606 = vmatpush1.msra.mxu0 0.0
    %1607 = vmatprep.subr.mxu0 0.0
    %1608 = vmatpush1.msra.mxu0 0.0
    %1609 = vmatprep.subr.mxu0 0.0
    %1610 = vmatpush1.msra.mxu0 0.0
    %1611 = vmatprep.subr.mxu0 0.0
    %1612 = vmatpush1.msra.mxu0 0.0
    %1613 = vmatprep.subr.mxu0 0.0
    %1614 = vmatpush1.msra.mxu0 0.0
    %1615 = vmatprep.subr.mxu0 0.0
    %1616 = vmatpush1.msra.mxu0 0.0
    %1617 = vmatprep.subr.mxu0 0.0
    %1618 = vmatpush1.msra.mxu0 0.0
    %1619 = vmatprep.subr.mxu0 0.0
    %1620 = vmatpush1.msra.mxu0 0.0
    %1621 = vmatprep.subr.mxu0 0.0
    %1622 = vmatpush1.msra.mxu0 0.0
    %1623 = vmatprep.subr.mxu0 0.0
    %1624 = vmatpush1.msra.mxu0 0.0
    %1625 = vmatprep.subr.mxu0 0.0
    %1626 = vmatpush1.msra.mxu0 0.0
    %1627 = vmatprep.subr.mxu0 0.0
    %1628 = vmatpush1.msra.mxu0 0.0
    %1629 = vmatprep.subr.mxu0 0.0
    %1630 = vmatpush1.msra.mxu0 %v1219
    %1631 = vmatprep.subr.mxu0 0.0
    %1632 = vmatpush1.msra.mxu0 %v1214
    %1633 = vmatprep.subr.mxu0 0.0
    %1634 = vmatpush2.msra.mxu0 0.0
    %1635 = vmatprep.subr.mxu0 0.0
    %1636 = vmatpush2.msra.mxu0 0.0
    %1637 = vmatprep.subr.mxu0 0.0
    %1638 = vmatpush2.msra.mxu0 0.0
    %1639 = vmatprep.subr.mxu0 0.0
    %1640 = vmatpush2.msra.mxu0 0.0
    %1641 = vmatprep.subr.mxu0 0.0
    %1642 = vmatpush2.msra.mxu0 0.0
    %1643 = vmatprep.subr.mxu0 0.0
    %1644 = vmatpush2.msra.mxu0 0.0
    %1645 = vmatprep.subr.mxu0 0.0
    %1646 = vmatpush2.msra.mxu0 0.0
    %1647 = vmatprep.subr.mxu0 0.0
    %1648 = vmatpush2.msra.mxu0 0.0
    %1649 = vmatprep.subr.mxu0 0.0
    %1650 = vmatpush2.msra.mxu0 0.0
    %1651 = vmatprep.subr.mxu0 0.0
    %1652 = vmatpush2.msra.mxu0 0.0
    %1653 = vmatprep.subr.mxu0 0.0
    %1654 = vmatpush2.msra.mxu0 0.0
    %1655 = vmatprep.subr.mxu0 0.0
    %1656 = vmatpush2.msra.mxu0 0.0
    %1657 = vmatprep.subr.mxu0 0.0
    %1658 = vmatpush2.msra.mxu0 0.0
    %1659 = vmatprep.subr.mxu0 0.0
    %1660 = vmatpush2.msra.mxu0 0.0
    %1661 = vmatprep.subr.mxu0 0.0
    %1662 = vmatpush2.msra.mxu0 0.0
    %1663 = vmatprep.subr.mxu0 0.0
    %1664 = vmatpush2.msra.mxu0 0.0
    %1665 = vmatprep.mubr.f32.mxu0 0.0
    %1666 = vmatmul.mubr.f32.gmra.mxu0 %v1596
    %v1667 = vpop.f32.mrf.mxu0
    %v1668 = vadd.f32 0.0, %v1667
    %v1669 = vpop.f32.mrf.mxu0
    %1670 = vmatprep.mubr.f32.mxu0 0.0
    %1671 = vmatmul.mubr.f32.gmra.mxu0 %v1599
    %v1672 = vpop.f32.mrf.mxu0
    %v1673 = vadd.f32 0.0, %v1672
    %v1674 = vpop.f32.mrf.mxu0
    %1675 = vdwg.mxu0
    %v1677 = vsel %vm377, %v1510, 0
    %v1680 = vsel %vm377, %v1511, 0
    %1682 = vmatprep.subr.mxu0 0.0
    %1683 = vmatpush1.msra.mxu0 0.0
    %1684 = vmatprep.subr.mxu0 0.0
    %1685 = vmatpush1.msra.mxu0 0.0
    %1686 = vmatprep.subr.mxu0 0.0
    %1687 = vmatpush1.msra.mxu0 0.0
    %1688 = vmatprep.subr.mxu0 0.0
    %1689 = vmatpush1.msra.mxu0 0.0
    %1690 = vmatprep.subr.mxu0 0.0
    %1691 = vmatpush1.msra.mxu0 0.0
    %1692 = vmatprep.subr.mxu0 0.0
    %1693 = vmatpush1.msra.mxu0 0.0
    %1694 = vmatprep.subr.mxu0 0.0
    %1695 = vmatpush1.msra.mxu0 0.0
    %1696 = vmatprep.subr.mxu0 0.0
    %1697 = vmatpush1.msra.mxu0 0.0
    %1698 = vmatprep.subr.mxu0 0.0
    %1699 = vmatpush1.msra.mxu0 0.0
    %1700 = vmatprep.subr.mxu0 0.0
    %1701 = vmatpush1.msra.mxu0 0.0
    %1702 = vmatprep.subr.mxu0 0.0
    %1703 = vmatpush1.msra.mxu0 0.0
    %1704 = vmatprep.subr.mxu0 0.0
    %1705 = vmatpush1.msra.mxu0 0.0
    %1706 = vmatprep.subr.mxu0 0.0
    %1707 = vmatpush1.msra.mxu0 0.0
    %1708 = vmatprep.subr.mxu0 0.0
    %1709 = vmatpush1.msra.mxu0 0.0
    %1710 = vmatprep.subr.mxu0 0.0
    %1711 = vmatpush1.msra.mxu0 %v1229
    %1712 = vmatprep.subr.mxu0 0.0
    %1713 = vmatpush1.msra.mxu0 %v1224
    %1714 = vmatprep.subr.mxu0 0.0
    %1715 = vmatpush2.msra.mxu0 0.0
    %1716 = vmatprep.subr.mxu0 0.0
    %1717 = vmatpush2.msra.mxu0 0.0
    %1718 = vmatprep.subr.mxu0 0.0
    %1719 = vmatpush2.msra.mxu0 0.0
    %1720 = vmatprep.subr.mxu0 0.0
    %1721 = vmatpush2.msra.mxu0 0.0
    %1722 = vmatprep.subr.mxu0 0.0
    %1723 = vmatpush2.msra.mxu0 0.0
    %1724 = vmatprep.subr.mxu0 0.0
    %1725 = vmatpush2.msra.mxu0 0.0
    %1726 = vmatprep.subr.mxu0 0.0
    %1727 = vmatpush2.msra.mxu0 0.0
    %1728 = vmatprep.subr.mxu0 0.0
    %1729 = vmatpush2.msra.mxu0 0.0
    %1730 = vmatprep.subr.mxu0 0.0
    %1731 = vmatpush2.msra.mxu0 0.0
    %1732 = vmatprep.subr.mxu0 0.0
    %1733 = vmatpush2.msra.mxu0 0.0
    %1734 = vmatprep.subr.mxu0 0.0
    %1735 = vmatpush2.msra.mxu0 0.0
    %1736 = vmatprep.subr.mxu0 0.0
    %1737 = vmatpush2.msra.mxu0 0.0
    %1738 = vmatprep.subr.mxu0 0.0
    %1739 = vmatpush2.msra.mxu0 0.0
    %1740 = vmatprep.subr.mxu0 0.0
    %1741 = vmatpush2.msra.mxu0 0.0
    %1742 = vmatprep.subr.mxu0 0.0
    %1743 = vmatpush2.msra.mxu0 0.0
    %1744 = vmatprep.subr.mxu0 0.0
    %1745 = vmatpush2.msra.mxu0 0.0
    %1746 = vmatprep.mubr.f32.mxu0 0.0
    %1747 = vmatmul.mubr.f32.gmra.mxu0 %v1677
    %v1748 = vpop.f32.mrf.mxu0
    %v1749 = vadd.f32 0.0, %v1748
    %v1750 = vpop.f32.mrf.mxu0
    %1751 = vmatprep.mubr.f32.mxu0 0.0
    %1752 = vmatmul.mubr.f32.gmra.mxu0 %v1680
    %v1753 = vpop.f32.mrf.mxu0
    %v1754 = vadd.f32 0.0, %v1753
    %v1755 = vpop.f32.mrf.mxu0
    %1756 = vdwg.mxu0
    %v1758 = vsel %vm377, %v1512, 0
    %v1761 = vsel %vm377, %v1513, 0
    %1763 = vmatprep.subr.mxu0 0.0
    %1764 = vmatpush1.msra.mxu0 0.0
    %1765 = vmatprep.subr.mxu0 0.0
    %1766 = vmatpush1.msra.mxu0 0.0
    %1767 = vmatprep.subr.mxu0 0.0
    %1768 = vmatpush1.msra.mxu0 0.0
    %1769 = vmatprep.subr.mxu0 0.0
    %1770 = vmatpush1.msra.mxu0 0.0
    %1771 = vmatprep.subr.mxu0 0.0
    %1772 = vmatpush1.msra.mxu0 0.0
    %1773 = vmatprep.subr.mxu0 0.0
    %1774 = vmatpush1.msra.mxu0 0.0
    %1775 = vmatprep.subr.mxu0 0.0
    %1776 = vmatpush1.msra.mxu0 0.0
    %1777 = vmatprep.subr.mxu0 0.0
    %1778 = vmatpush1.msra.mxu0 0.0
    %1779 = vmatprep.subr.mxu0 0.0
    %1780 = vmatpush1.msra.mxu0 0.0
    %1781 = vmatprep.subr.mxu0 0.0
    %1782 = vmatpush1.msra.mxu0 0.0
    %1783 = vmatprep.subr.mxu0 0.0
    %1784 = vmatpush1.msra.mxu0 0.0
    %1785 = vmatprep.subr.mxu0 0.0
    %1786 = vmatpush1.msra.mxu0 0.0
    %1787 = vmatprep.subr.mxu0 0.0
    %1788 = vmatpush1.msra.mxu0 0.0
    %1789 = vmatprep.subr.mxu0 0.0
    %1790 = vmatpush1.msra.mxu0 0.0
    %1791 = vmatprep.subr.mxu0 0.0
    %1792 = vmatpush1.msra.mxu0 %v1239
    %1793 = vmatprep.subr.mxu0 0.0
    %1794 = vmatpush1.msra.mxu0 %v1234
    %1795 = vmatprep.subr.mxu0 0.0
    %1796 = vmatpush2.msra.mxu0 0.0
    %1797 = vmatprep.subr.mxu0 0.0
    %1798 = vmatpush2.msra.mxu0 0.0
    %1799 = vmatprep.subr.mxu0 0.0
    %1800 = vmatpush2.msra.mxu0 0.0
    %1801 = vmatprep.subr.mxu0 0.0
    %1802 = vmatpush2.msra.mxu0 0.0
    %1803 = vmatprep.subr.mxu0 0.0
    %1804 = vmatpush2.msra.mxu0 0.0
    %1805 = vmatprep.subr.mxu0 0.0
    %1806 = vmatpush2.msra.mxu0 0.0
    %1807 = vmatprep.subr.mxu0 0.0
    %1808 = vmatpush2.msra.mxu0 0.0
    %1809 = vmatprep.subr.mxu0 0.0
    %1810 = vmatpush2.msra.mxu0 0.0
    %1811 = vmatprep.subr.mxu0 0.0
    %1812 = vmatpush2.msra.mxu0 0.0
    %1813 = vmatprep.subr.mxu0 0.0
    %1814 = vmatpush2.msra.mxu0 0.0
    %1815 = vmatprep.subr.mxu0 0.0
    %1816 = vmatpush2.msra.mxu0 0.0
    %1817 = vmatprep.subr.mxu0 0.0
    %1818 = vmatpush2.msra.mxu0 0.0
    %1819 = vmatprep.subr.mxu0 0.0
    %1820 = vmatpush2.msra.mxu0 0.0
    %1821 = vmatprep.subr.mxu0 0.0
    %1822 = vmatpush2.msra.mxu0 0.0
    %1823 = vmatprep.subr.mxu0 0.0
    %1824 = vmatpush2.msra.mxu0 0.0
    %1825 = vmatprep.subr.mxu0 0.0
    %1826 = vmatpush2.msra.mxu0 0.0
    %1827 = vmatprep.mubr.f32.mxu0 0.0
    %1828 = vmatmul.mubr.f32.gmra.mxu0 %v1758
    %v1829 = vpop.f32.mrf.mxu0
    %v1830 = vadd.f32 0.0, %v1829
    %v1831 = vpop.f32.mrf.mxu0
    %1832 = vmatprep.mubr.f32.mxu0 0.0
    %1833 = vmatmul.mubr.f32.gmra.mxu0 %v1761
    %v1834 = vpop.f32.mrf.mxu0
    %v1835 = vadd.f32 0.0, %v1834
    %v1836 = vpop.f32.mrf.mxu0
    %1837 = vdwg.mxu0
    %v1838 = vmax.f32 %v1587, 0.0
    %v1839 = vmax.f32 %v1592, 0.0
    %v1840 = vmax.f32 %v1668, 0.0
    %v1841 = vmax.f32 %v1673, 0.0
    %v1842 = vmax.f32 %v1749, 0.0
    %v1843 = vmax.f32 %v1754, 0.0
    %v1844 = vmax.f32 %v1830, 0.0
    %v1845 = vmax.f32 %v1835, 0.0
    %v1846 = vld [vmem:[#allocation5 + $0x40] sm:$0xff]
    %v1847 = vld [vmem:[#allocation5 + $0x48] sm:$0xff]
    %v1849 = vsel %vm377, %v317, 0
    %v1852 = vsel %vm377, %v322, 0
    %v1855 = vsel %vm377, %v327, 0
    %v1858 = vsel %vm377, %v332, 0
    %v1861 = vsel %vm377, %v337, 0
    %v1864 = vsel %vm377, %v342, 0
    %v1867 = vsel %vm377, %v347, 0
    %v1870 = vsel %vm377, %v352, 0
    %v1873 = vsel %vm377, %v357, 0
    %v1876 = vsel %vm377, %v362, 0
    %v1879 = vsel %vm377, %v367, 0
    %v1882 = vsel %vm377, %v372, 0
    %1884 = vmatprep.subr.mxu0 0.0
    %1885 = vmatpush1.msra.mxu0 0.0
    %1886 = vmatprep.subr.mxu0 0.0
    %1887 = vmatpush1.msra.mxu0 0.0
    %1888 = vmatprep.subr.mxu0 0.0
    %1889 = vmatpush1.msra.mxu0 0.0
    %1890 = vmatprep.subr.mxu0 0.0
    %1891 = vmatpush1.msra.mxu0 0.0
    %1892 = vmatprep.subr.mxu0 0.0
    %1893 = vmatpush1.msra.mxu0 0.0
    %1894 = vmatprep.subr.mxu0 0.0
    %1895 = vmatpush1.msra.mxu0 0.0
    %1896 = vmatprep.subr.mxu0 0.0
    %1897 = vmatpush1.msra.mxu0 0.0
    %1898 = vmatprep.subr.mxu0 0.0
    %1899 = vmatpush1.msra.mxu0 0.0
    %1900 = vmatprep.subr.mxu0 0.0
    %1901 = vmatpush1.msra.mxu0 0.0
    %1902 = vmatprep.subr.mxu0 0.0
    %1903 = vmatpush1.msra.mxu0 0.0
    %1904 = vmatprep.subr.mxu0 0.0
    %1905 = vmatpush1.msra.mxu0 0.0
    %1906 = vmatprep.subr.mxu0 0.0
    %1907 = vmatpush1.msra.mxu0 0.0
    %1908 = vmatprep.subr.mxu0 0.0
    %1909 = vmatpush1.msra.mxu0 0.0
    %1910 = vmatprep.subr.mxu0 0.0
    %1911 = vmatpush1.msra.mxu0 0.0
    %1912 = vmatprep.subr.mxu0 0.0
    %1913 = vmatpush1.msra.mxu0 %v1847
    %1914 = vmatprep.subr.mxu0 0.0
    %1915 = vmatpush1.msra.mxu0 %v1846
    %1916 = vmatprep.subr.mxu0 0.0
    %1917 = vmatpush2.msra.mxu0 0.0
    %1918 = vmatprep.subr.mxu0 0.0
    %1919 = vmatpush2.msra.mxu0 0.0
    %1920 = vmatprep.subr.mxu0 0.0
    %1921 = vmatpush2.msra.mxu0 0.0
    %1922 = vmatprep.subr.mxu0 0.0
    %1923 = vmatpush2.msra.mxu0 0.0
    %1924 = vmatprep.subr.mxu0 0.0
    %1925 = vmatpush2.msra.mxu0 0.0
    %1926 = vmatprep.subr.mxu0 0.0
    %1927 = vmatpush2.msra.mxu0 0.0
    %1928 = vmatprep.subr.mxu0 0.0
    %1929 = vmatpush2.msra.mxu0 0.0
    %1930 = vmatprep.subr.mxu0 0.0
    %1931 = vmatpush2.msra.mxu0 0.0
    %1932 = vmatprep.subr.mxu0 0.0
    %1933 = vmatpush2.msra.mxu0 0.0
    %1934 = vmatprep.subr.mxu0 0.0
    %1935 = vmatpush2.msra.mxu0 0.0
    %1936 = vmatprep.subr.mxu0 0.0
    %1937 = vmatpush2.msra.mxu0 0.0
    %1938 = vmatprep.subr.mxu0 0.0
    %1939 = vmatpush2.msra.mxu0 0.0
    %1940 = vmatprep.subr.mxu0 0.0
    %1941 = vmatpush2.msra.mxu0 0.0
    %1942 = vmatprep.subr.mxu0 0.0
    %1943 = vmatpush2.msra.mxu0 0.0
    %1944 = vmatprep.subr.mxu0 0.0
    %1945 = vmatpush2.msra.mxu0 0.0
    %1946 = vmatprep.subr.mxu0 0.0
    %1947 = vmatpush2.msra.mxu0 0.0
    %1948 = vmatprep.mubr.f32.mxu0 0.0
    %1949 = vmatmul.mubr.f32.gmra.mxu0 %v1849
    %v1950 = vpop.f32.mrf.mxu0
    %v1951 = vadd.f32 0.0, %v1950
    %v1952 = vpop.f32.mrf.mxu0
    %1953 = vmatprep.mubr.f32.mxu0 0.0
    %1954 = vmatmul.mubr.f32.gmra.mxu0 %v1852
    %v1955 = vpop.f32.mrf.mxu0
    %v1956 = vadd.f32 0.0, %v1955
    %v1957 = vpop.f32.mrf.mxu0
    %1958 = vmatprep.mubr.f32.mxu0 0.0
    %1959 = vmatmul.mubr.f32.gmra.mxu0 %v1855
    %v1960 = vpop.f32.mrf.mxu0
    %v1961 = vadd.f32 0.0, %v1960
    %v1962 = vpop.f32.mrf.mxu0
    %1963 = vmatprep.mubr.f32.mxu0 0.0
    %1964 = vmatmul.mubr.f32.gmra.mxu0 %v1858
    %v1965 = vpop.f32.mrf.mxu0
    %v1966 = vadd.f32 0.0, %v1965
    %v1967 = vpop.f32.mrf.mxu0
    %1968 = vmatprep.mubr.f32.mxu0 0.0
    %1969 = vmatmul.mubr.f32.gmra.mxu0 %v1861
    %v1970 = vpop.f32.mrf.mxu0
    %v1971 = vadd.f32 0.0, %v1970
    %v1972 = vpop.f32.mrf.mxu0
    %1973 = vmatprep.mubr.f32.mxu0 0.0
    %1974 = vmatmul.mubr.f32.gmra.mxu0 %v1864
    %v1975 = vpop.f32.mrf.mxu0
    %v1976 = vadd.f32 0.0, %v1975
    %v1977 = vpop.f32.mrf.mxu0
    %1978 = vmatprep.mubr.f32.mxu0 0.0
    %1979 = vmatmul.mubr.f32.gmra.mxu0 %v1867
    %v1980 = vpop.f32.mrf.mxu0
    %v1981 = vadd.f32 0.0, %v1980
    %v1982 = vpop.f32.mrf.mxu0
    %1983 = vmatprep.mubr.f32.mxu0 0.0
    %1984 = vmatmul.mubr.f32.gmra.mxu0 %v1870
    %v1985 = vpop.f32.mrf.mxu0
    %v1986 = vadd.f32 0.0, %v1985
    %v1987 = vpop.f32.mrf.mxu0
    %1988 = vmatprep.mubr.f32.mxu0 0.0
    %1989 = vmatmul.mubr.f32.gmra.mxu0 %v1873
    %v1990 = vpop.f32.mrf.mxu0
    %v1991 = vadd.f32 0.0, %v1990
    %v1992 = vpop.f32.mrf.mxu0
    %1993 = vmatprep.mubr.f32.mxu0 0.0
    %1994 = vmatmul.mubr.f32.gmra.mxu0 %v1876
    %v1995 = vpop.f32.mrf.mxu0
    %v1996 = vadd.f32 0.0, %v1995
    %v1997 = vpop.f32.mrf.mxu0
    %1998 = vmatprep.mubr.f32.mxu0 0.0
    %1999 = vmatmul.mubr.f32.gmra.mxu0 %v1879
    %v2000 = vpop.f32.mrf.mxu0
    %v2001 = vadd.f32 0.0, %v2000
    %v2002 = vpop.f32.mrf.mxu0
    %2003 = vmatprep.mubr.f32.mxu0 0.0
    %2004 = vmatmul.mubr.f32.gmra.mxu0 %v1882
    %v2005 = vpop.f32.mrf.mxu0
    %v2006 = vadd.f32 0.0, %v2005
    %v2007 = vpop.f32.mrf.mxu0
    %2008 = vdwg.mxu0
    %2021 = vrot.lane.b32.xlu0 %v1951, 112
    %v2022 = vpop.permute.xlu0 %2021
    %2023 = vrot.lane.b32.xlu0 %v1956, 112
    %v2024 = vpop.permute.xlu0 %2023
    %2025 = vrot.lane.b32.xlu0 %v1961, 112
    %v2026 = vpop.permute.xlu0 %2025
    %2027 = vrot.lane.b32.xlu0 %v1966, 112
    %v2028 = vpop.permute.xlu0 %2027
    %2029 = vrot.lane.b32.xlu0 %v1971, 112
    %v2030 = vpop.permute.xlu0 %2029
    %2031 = vrot.lane.b32.xlu0 %v1976, 112
    %v2032 = vpop.permute.xlu0 %2031
    %2033 = vrot.lane.b32.xlu0 %v1981, 112
    %v2034 = vpop.permute.xlu0 %2033
    %2035 = vrot.lane.b32.xlu0 %v1986, 112
    %v2036 = vpop.permute.xlu0 %2035
    %2037 = vrot.lane.b32.xlu0 %v1991, 112
    %v2038 = vpop.permute.xlu0 %2037
    %2039 = vrot.lane.b32.xlu0 %v1996, 112
    %v2040 = vpop.permute.xlu0 %2039
    %2041 = vrot.lane.b32.xlu0 %v2001, 112
    %v2042 = vpop.permute.xlu0 %2041
    %2043 = vrot.lane.b32.xlu0 %v2006, 112
    %v2044 = vpop.permute.xlu0 %2043
    %2057 = vxpose.xlu0.b32.start [1/16] %v2022, 128
    %2058 = vxpose.xlu0.b32.cont [2/16] %v2024, 128
    %2059 = vxpose.xlu0.b32.cont [3/16] %v2026, 128
    %2060 = vxpose.xlu0.b32.cont [4/16] 0.0, 128
    %2061 = vxpose.xlu0.b32.cont [5/16] 0.0, 128
    %2062 = vxpose.xlu0.b32.cont [6/16] 0.0, 128
    %2063 = vxpose.xlu0.b32.cont [7/16] 0.0, 128
    %2064 = vxpose.xlu0.b32.cont [8/16] 0.0, 128
    %2065 = vxpose.xlu0.b32.cont [9/16] 0.0, 128
    %2066 = vxpose.xlu0.b32.cont [10/16] 0.0, 128
    %2067 = vxpose.xlu0.b32.cont [11/16] 0.0, 128
    %2068 = vxpose.xlu0.b32.cont [12/16] 0.0, 128
    %2069 = vxpose.xlu0.b32.cont [13/16] 0.0, 128
    %2070 = vxpose.xlu0.b32.cont [14/16] 0.0, 128
    %2071 = vxpose.xlu0.b32.cont [15/16] 0.0, 128
    %2072 = vxpose.xlu0.b32.end [16/16] 0.0, 128
    %v2073 = vpop.trf.xlu0
    %v2074 = vpop.trf.xlu0
    %v2075 = vpop.trf.xlu0
    %v2076 = vpop.trf.xlu0
    %v2077 = vpop.trf.xlu0
    %v2078 = vpop.trf.xlu0
    %v2079 = vpop.trf.xlu0
    %v2080 = vpop.trf.xlu0
    %v2081 = vpop.trf.xlu0
    %v2082 = vpop.trf.xlu0
    %v2083 = vpop.trf.xlu0
    %v2084 = vpop.trf.xlu0
    %v2085 = vpop.trf.xlu0
    %v2086 = vpop.trf.xlu0
    %v2087 = vpop.trf.xlu0
    %v2088 = vpop.trf.xlu0
    %2089 = vxpose.xlu0.b32.start [1/16] %v2028, 128
    %2090 = vxpose.xlu0.b32.cont [2/16] %v2030, 128
    %2091 = vxpose.xlu0.b32.cont [3/16] %v2032, 128
    %2092 = vxpose.xlu0.b32.cont [4/16] 0.0, 128
    %2093 = vxpose.xlu0.b32.cont [5/16] 0.0, 128
    %2094 = vxpose.xlu0.b32.cont [6/16] 0.0, 128
    %2095 = vxpose.xlu0.b32.cont [7/16] 0.0, 128
    %2096 = vxpose.xlu0.b32.cont [8/16] 0.0, 128
    %2097 = vxpose.xlu0.b32.cont [9/16] 0.0, 128
    %2098 = vxpose.xlu0.b32.cont [10/16] 0.0, 128
    %2099 = vxpose.xlu0.b32.cont [11/16] 0.0, 128
    %2100 = vxpose.xlu0.b32.cont [12/16] 0.0, 128
    %2101 = vxpose.xlu0.b32.cont [13/16] 0.0, 128
    %2102 = vxpose.xlu0.b32.cont [14/16] 0.0, 128
    %2103 = vxpose.xlu0.b32.cont [15/16] 0.0, 128
    %2104 = vxpose.xlu0.b32.end [16/16] 0.0, 128
    %v2105 = vpop.trf.xlu0
    %v2106 = vpop.trf.xlu0
    %v2107 = vpop.trf.xlu0
    %v2108 = vpop.trf.xlu0
    %v2109 = vpop.trf.xlu0
    %v2110 = vpop.trf.xlu0
    %v2111 = vpop.trf.xlu0
    %v2112 = vpop.trf.xlu0
    %v2113 = vpop.trf.xlu0
    %v2114 = vpop.trf.xlu0
    %v2115 = vpop.trf.xlu0
    %v2116 = vpop.trf.xlu0
    %v2117 = vpop.trf.xlu0
    %v2118 = vpop.trf.xlu0
    %v2119 = vpop.trf.xlu0
    %v2120 = vpop.trf.xlu0
    %2121 = vxpose.xlu0.b32.start [1/16] %v2034, 128
    %2122 = vxpose.xlu0.b32.cont [2/16] %v2036, 128
    %2123 = vxpose.xlu0.b32.cont [3/16] %v2038, 128
    %2124 = vxpose.xlu0.b32.cont [4/16] 0.0, 128
    %2125 = vxpose.xlu0.b32.cont [5/16] 0.0, 128
    %2126 = vxpose.xlu0.b32.cont [6/16] 0.0, 128
    %2127 = vxpose.xlu0.b32.cont [7/16] 0.0, 128
    %2128 = vxpose.xlu0.b32.cont [8/16] 0.0, 128
    %2129 = vxpose.xlu0.b32.cont [9/16] 0.0, 128
    %2130 = vxpose.xlu0.b32.cont [10/16] 0.0, 128
    %2131 = vxpose.xlu0.b32.cont [11/16] 0.0, 128
    %2132 = vxpose.xlu0.b32.cont [12/16] 0.0, 128
    %2133 = vxpose.xlu0.b32.cont [13/16] 0.0, 128
    %2134 = vxpose.xlu0.b32.cont [14/16] 0.0, 128
    %2135 = vxpose.xlu0.b32.cont [15/16] 0.0, 128
    %2136 = vxpose.xlu0.b32.end [16/16] 0.0, 128
    %v2137 = vpop.trf.xlu0
    %v2138 = vpop.trf.xlu0
    %v2139 = vpop.trf.xlu0
    %v2140 = vpop.trf.xlu0
    %v2141 = vpop.trf.xlu0
    %v2142 = vpop.trf.xlu0
    %v2143 = vpop.trf.xlu0
    %v2144 = vpop.trf.xlu0
    %v2145 = vpop.trf.xlu0
    %v2146 = vpop.trf.xlu0
    %v2147 = vpop.trf.xlu0
    %v2148 = vpop.trf.xlu0
    %v2149 = vpop.trf.xlu0
    %v2150 = vpop.trf.xlu0
    %v2151 = vpop.trf.xlu0
    %v2152 = vpop.trf.xlu0
    %2153 = vxpose.xlu0.b32.start [1/16] %v2040, 128
    %2154 = vxpose.xlu0.b32.cont [2/16] %v2042, 128
    %2155 = vxpose.xlu0.b32.cont [3/16] %v2044, 128
    %2156 = vxpose.xlu0.b32.cont [4/16] 0.0, 128
    %2157 = vxpose.xlu0.b32.cont [5/16] 0.0, 128
    %2158 = vxpose.xlu0.b32.cont [6/16] 0.0, 128
    %2159 = vxpose.xlu0.b32.cont [7/16] 0.0, 128
    %2160 = vxpose.xlu0.b32.cont [8/16] 0.0, 128
    %2161 = vxpose.xlu0.b32.cont [9/16] 0.0, 128
    %2162 = vxpose.xlu0.b32.cont [10/16] 0.0, 128
    %2163 = vxpose.xlu0.b32.cont [11/16] 0.0, 128
    %2164 = vxpose.xlu0.b32.cont [12/16] 0.0, 128
    %2165 = vxpose.xlu0.b32.cont [13/16] 0.0, 128
    %2166 = vxpose.xlu0.b32.cont [14/16] 0.0, 128
    %2167 = vxpose.xlu0.b32.cont [15/16] 0.0, 128
    %2168 = vxpose.xlu0.b32.end [16/16] 0.0, 128
    %v2169 = vpop.trf.xlu0
    %v2170 = vpop.trf.xlu0
    %v2171 = vpop.trf.xlu0
    %v2172 = vpop.trf.xlu0
    %v2173 = vpop.trf.xlu0
    %v2174 = vpop.trf.xlu0
    %v2175 = vpop.trf.xlu0
    %v2176 = vpop.trf.xlu0
    %v2177 = vpop.trf.xlu0
    %v2178 = vpop.trf.xlu0
    %v2179 = vpop.trf.xlu0
    %v2180 = vpop.trf.xlu0
    %v2181 = vpop.trf.xlu0
    %v2182 = vpop.trf.xlu0
    %v2183 = vpop.trf.xlu0
    %v2184 = vpop.trf.xlu0
    %2185 = vset.pattern.permute.xlu0 17
    %2186 = vperm.xlu0 %2185, %v1951
    %v2187 = vpop.permute.xlu0 %2186
    %2189 = vset.pattern.permute.xlu0 17
    %2190 = vperm.xlu0 %2189, %v1966
    %v2191 = vpop.permute.xlu0 %2190
    %2193 = vset.pattern.permute.xlu0 17
    %2194 = vperm.xlu0 %2193, %v1981
    %v2195 = vpop.permute.xlu0 %2194
    %2197 = vset.pattern.permute.xlu0 17
    %2198 = vperm.xlu0 %2197, %v1996
    %v2199 = vpop.permute.xlu0 %2198
    %v2201 = vlaneseq
    %v2202 = vshrl.u32 %v2201, 7
    %v2203 = vsub.s32 0, %v2202
    %v2204 = vrot.slane %v2073, %v2203
    %v2205 = vlaneseq
    %v2206 = vshrl.u32 %v2205, 7
    %v2207 = vsub.s32 0, %v2206
    %v2208 = vrot.slane %v2105, %v2207
    %v2209 = vlaneseq
    %v2210 = vshrl.u32 %v2209, 7
    %v2211 = vsub.s32 0, %v2210
    %v2212 = vrot.slane %v2137, %v2211
    %v2213 = vlaneseq
    %v2214 = vshrl.u32 %v2213, 7
    %v2215 = vsub.s32 0, %v2214
    %v2216 = vrot.slane %v2169, %v2215
    %v2217 = vadd.f32 %v2187, %v2204
    %v2218 = vadd.f32 %v2191, %v2208
    %v2219 = vadd.f32 %v2195, %v2212
    %v2220 = vadd.f32 %v2199, %v2216
    %vm2221 = vcmp.gt.f32.partialorder %v2217, 0.0
    %vm2222 = vcmp.gt.f32.partialorder %v2218, 0.0
    %vm2223 = vcmp.gt.f32.partialorder %v2219, 0.0
    %vm2224 = vcmp.gt.f32.partialorder %v2220, 0.0
    %v2225 = vmin.f32 %v2217, 0.0
    %v2226 = vmin.f32 %v2218, 0.0
    %v2227 = vmin.f32 %v2219, 0.0
    %v2228 = vmin.f32 %v2220, 0.0
    %v2229 = vmul.f32 %v2225, 1.442695
    %v2230 = vpow.pop %v2229
    %v2231 = vmul.f32 %v2226, 1.442695
    %v2232 = vpow.pop %v2231
    %v2233 = vmul.f32 %v2227, 1.442695
    %v2234 = vpow.pop %v2233
    %v2235 = vmul.f32 %v2228, 1.442695
    %v2236 = vpow.pop %v2235
    %v2237 = vsub.f32 %v2230, 1.0
    %v2238 = vsub.f32 %v2232, 1.0
    %v2239 = vsub.f32 %v2234, 1.0
    %v2240 = vsub.f32 %v2236, 1.0
    %v2241 = vsel %vm2221, %v2217, %v2237
    %v2242 = vsel %vm2222, %v2218, %v2238
    %v2243 = vsel %vm2223, %v2219, %v2239
    %v2244 = vsel %vm2224, %v2220, %v2240
    %v2245 = vmul.f32 %v68, %v2241
    %v2246 = vmul.f32 %v69, %v2242
    %v2247 = vmul.f32 %v70, %v2243
    %v2248 = vmul.f32 %v71, %v2244
    %vm2249 = vcmask 195584
    %v2251 = vsel %vm2249, %v2245, 0
    %2253 = vmatprep.subr.mxu0 0.0
    %2254 = vmatpush1.msra.mxu0 0.0
    %2255 = vmatprep.subr.mxu0 0.0
    %2256 = vmatpush1.msra.mxu0 0.0
    %2257 = vmatprep.subr.mxu0 0.0
    %2258 = vmatpush1.msra.mxu0 0.0
    %2259 = vmatprep.subr.mxu0 0.0
    %2260 = vmatpush1.msra.mxu0 0.0
    %2261 = vmatprep.subr.mxu0 0.0
    %2262 = vmatpush1.msra.mxu0 0.0
    %2263 = vmatprep.subr.mxu0 0.0
    %2264 = vmatpush1.msra.mxu0 0.0
    %2265 = vmatprep.subr.mxu0 0.0
    %2266 = vmatpush1.msra.mxu0 0.0
    %2267 = vmatprep.subr.mxu0 0.0
    %2268 = vmatpush1.msra.mxu0 0.0
    %2269 = vmatprep.subr.mxu0 0.0
    %2270 = vmatpush1.msra.mxu0 0.0
    %2271 = vmatprep.subr.mxu0 0.0
    %2272 = vmatpush1.msra.mxu0 0.0
    %2273 = vmatprep.subr.mxu0 0.0
    %2274 = vmatpush1.msra.mxu0 0.0
    %2275 = vmatprep.subr.mxu0 0.0
    %2276 = vmatpush1.msra.mxu0 0.0
    %2277 = vmatprep.subr.mxu0 0.0
    %2278 = vmatpush1.msra.mxu0 0.0
    %2279 = vmatprep.subr.mxu0 0.0
    %2280 = vmatpush1.msra.mxu0 %v1961
    %2281 = vmatprep.subr.mxu0 0.0
    %2282 = vmatpush1.msra.mxu0 %v1956
    %2283 = vmatprep.subr.mxu0 0.0
    %2284 = vmatpush1.msra.mxu0 %v1951
    %2285 = vmatprep.subr.mxu0 0.0
    %2286 = vmatpush2.msra.mxu0 0.0
    %2287 = vmatprep.subr.mxu0 0.0
    %2288 = vmatpush2.msra.mxu0 0.0
    %2289 = vmatprep.subr.mxu0 0.0
    %2290 = vmatpush2.msra.mxu0 0.0
    %2291 = vmatprep.subr.mxu0 0.0
    %2292 = vmatpush2.msra.mxu0 0.0
    %2293 = vmatprep.subr.mxu0 0.0
    %2294 = vmatpush2.msra.mxu0 0.0
    %2295 = vmatprep.subr.mxu0 0.0
    %2296 = vmatpush2.msra.mxu0 0.0
    %2297 = vmatprep.subr.mxu0 0.0
    %2298 = vmatpush2.msra.mxu0 0.0
    %2299 = vmatprep.subr.mxu0 0.0
    %2300 = vmatpush2.msra.mxu0 0.0
    %2301 = vmatprep.subr.mxu0 0.0
    %2302 = vmatpush2.msra.mxu0 0.0
    %2303 = vmatprep.subr.mxu0 0.0
    %2304 = vmatpush2.msra.mxu0 0.0
    %2305 = vmatprep.subr.mxu0 0.0
    %2306 = vmatpush2.msra.mxu0 0.0
    %2307 = vmatprep.subr.mxu0 0.0
    %2308 = vmatpush2.msra.mxu0 0.0
    %2309 = vmatprep.subr.mxu0 0.0
    %2310 = vmatpush2.msra.mxu0 0.0
    %2311 = vmatprep.subr.mxu0 0.0
    %2312 = vmatpush2.msra.mxu0 0.0
    %2313 = vmatprep.subr.mxu0 0.0
    %2314 = vmatpush2.msra.mxu0 0.0
    %2315 = vmatprep.subr.mxu0 0.0
    %2316 = vmatpush2.msra.mxu0 0.0
    %2317 = vmatprep.mubr.f32.mxu0 0.0
    %2318 = vmatmul.mubr.f32.gmra.mxu0 %v2251
    %v2319 = vpop.f32.mrf.mxu0
    %v2320 = vadd.f32 0.0, %v2319
    %v2321 = vpop.f32.mrf.mxu0
    %2322 = vdwg.mxu0
    %v2324 = vsel %vm2249, %v2246, 0
    %2326 = vmatprep.subr.mxu0 0.0
    %2327 = vmatpush1.msra.mxu0 0.0
    %2328 = vmatprep.subr.mxu0 0.0
    %2329 = vmatpush1.msra.mxu0 0.0
    %2330 = vmatprep.subr.mxu0 0.0
    %2331 = vmatpush1.msra.mxu0 0.0
    %2332 = vmatprep.subr.mxu0 0.0
    %2333 = vmatpush1.msra.mxu0 0.0
    %2334 = vmatprep.subr.mxu0 0.0
    %2335 = vmatpush1.msra.mxu0 0.0
    %2336 = vmatprep.subr.mxu0 0.0
    %2337 = vmatpush1.msra.mxu0 0.0
    %2338 = vmatprep.subr.mxu0 0.0
    %2339 = vmatpush1.msra.mxu0 0.0
    %2340 = vmatprep.subr.mxu0 0.0
    %2341 = vmatpush1.msra.mxu0 0.0
    %2342 = vmatprep.subr.mxu0 0.0
    %2343 = vmatpush1.msra.mxu0 0.0
    %2344 = vmatprep.subr.mxu0 0.0
    %2345 = vmatpush1.msra.mxu0 0.0
    %2346 = vmatprep.subr.mxu0 0.0
    %2347 = vmatpush1.msra.mxu0 0.0
    %2348 = vmatprep.subr.mxu0 0.0
    %2349 = vmatpush1.msra.mxu0 0.0
    %2350 = vmatprep.subr.mxu0 0.0
    %2351 = vmatpush1.msra.mxu0 0.0
    %2352 = vmatprep.subr.mxu0 0.0
    %2353 = vmatpush1.msra.mxu0 %v1976
    %2354 = vmatprep.subr.mxu0 0.0
    %2355 = vmatpush1.msra.mxu0 %v1971
    %2356 = vmatprep.subr.mxu0 0.0
    %2357 = vmatpush1.msra.mxu0 %v1966
    %2358 = vmatprep.subr.mxu0 0.0
    %2359 = vmatpush2.msra.mxu0 0.0
    %2360 = vmatprep.subr.mxu0 0.0
    %2361 = vmatpush2.msra.mxu0 0.0
    %2362 = vmatprep.subr.mxu0 0.0
    %2363 = vmatpush2.msra.mxu0 0.0
    %2364 = vmatprep.subr.mxu0 0.0
    %2365 = vmatpush2.msra.mxu0 0.0
    %2366 = vmatprep.subr.mxu0 0.0
    %2367 = vmatpush2.msra.mxu0 0.0
    %2368 = vmatprep.subr.mxu0 0.0
    %2369 = vmatpush2.msra.mxu0 0.0
    %2370 = vmatprep.subr.mxu0 0.0
    %2371 = vmatpush2.msra.mxu0 0.0
    %2372 = vmatprep.subr.mxu0 0.0
    %2373 = vmatpush2.msra.mxu0 0.0
    %2374 = vmatprep.subr.mxu0 0.0
    %2375 = vmatpush2.msra.mxu0 0.0
    %2376 = vmatprep.subr.mxu0 0.0
    %2377 = vmatpush2.msra.mxu0 0.0
    %2378 = vmatprep.subr.mxu0 0.0
    %2379 = vmatpush2.msra.mxu0 0.0
    %2380 = vmatprep.subr.mxu0 0.0
    %2381 = vmatpush2.msra.mxu0 0.0
    %2382 = vmatprep.subr.mxu0 0.0
    %2383 = vmatpush2.msra.mxu0 0.0
    %2384 = vmatprep.subr.mxu0 0.0
    %2385 = vmatpush2.msra.mxu0 0.0
    %2386 = vmatprep.subr.mxu0 0.0
    %2387 = vmatpush2.msra.mxu0 0.0
    %2388 = vmatprep.subr.mxu0 0.0
    %2389 = vmatpush2.msra.mxu0 0.0
    %2390 = vmatprep.mubr.f32.mxu0 0.0
    %2391 = vmatmul.mubr.f32.gmra.mxu0 %v2324
    %v2392 = vpop.f32.mrf.mxu0
    %v2393 = vadd.f32 0.0, %v2392
    %v2394 = vpop.f32.mrf.mxu0
    %2395 = vdwg.mxu0
    %v2397 = vsel %vm2249, %v2247, 0
    %2399 = vmatprep.subr.mxu0 0.0
    %2400 = vmatpush1.msra.mxu0 0.0
    %2401 = vmatprep.subr.mxu0 0.0
    %2402 = vmatpush1.msra.mxu0 0.0
    %2403 = vmatprep.subr.mxu0 0.0
    %2404 = vmatpush1.msra.mxu0 0.0
    %2405 = vmatprep.subr.mxu0 0.0
    %2406 = vmatpush1.msra.mxu0 0.0
    %2407 = vmatprep.subr.mxu0 0.0
    %2408 = vmatpush1.msra.mxu0 0.0
    %2409 = vmatprep.subr.mxu0 0.0
    %2410 = vmatpush1.msra.mxu0 0.0
    %2411 = vmatprep.subr.mxu0 0.0
    %2412 = vmatpush1.msra.mxu0 0.0
    %2413 = vmatprep.subr.mxu0 0.0
    %2414 = vmatpush1.msra.mxu0 0.0
    %2415 = vmatprep.subr.mxu0 0.0
    %2416 = vmatpush1.msra.mxu0 0.0
    %2417 = vmatprep.subr.mxu0 0.0
    %2418 = vmatpush1.msra.mxu0 0.0
    %2419 = vmatprep.subr.mxu0 0.0
    %2420 = vmatpush1.msra.mxu0 0.0
    %2421 = vmatprep.subr.mxu0 0.0
    %2422 = vmatpush1.msra.mxu0 0.0
    %2423 = vmatprep.subr.mxu0 0.0
    %2424 = vmatpush1.msra.mxu0 0.0
    %2425 = vmatprep.subr.mxu0 0.0
    %2426 = vmatpush1.msra.mxu0 %v1991
    %2427 = vmatprep.subr.mxu0 0.0
    %2428 = vmatpush1.msra.mxu0 %v1986
    %2429 = vmatprep.subr.mxu0 0.0
    %2430 = vmatpush1.msra.mxu0 %v1981
    %2431 = vmatprep.subr.mxu0 0.0
    %2432 = vmatpush2.msra.mxu0 0.0
    %2433 = vmatprep.subr.mxu0 0.0
    %2434 = vmatpush2.msra.mxu0 0.0
    %2435 = vmatprep.subr.mxu0 0.0
    %2436 = vmatpush2.msra.mxu0 0.0
    %2437 = vmatprep.subr.mxu0 0.0
    %2438 = vmatpush2.msra.mxu0 0.0
    %2439 = vmatprep.subr.mxu0 0.0
    %2440 = vmatpush2.msra.mxu0 0.0
    %2441 = vmatprep.subr.mxu0 0.0
    %2442 = vmatpush2.msra.mxu0 0.0
    %2443 = vmatprep.subr.mxu0 0.0
    %2444 = vmatpush2.msra.mxu0 0.0
    %2445 = vmatprep.subr.mxu0 0.0
    %2446 = vmatpush2.msra.mxu0 0.0
    %2447 = vmatprep.subr.mxu0 0.0
    %2448 = vmatpush2.msra.mxu0 0.0
    %2449 = vmatprep.subr.mxu0 0.0
    %2450 = vmatpush2.msra.mxu0 0.0
    %2451 = vmatprep.subr.mxu0 0.0
    %2452 = vmatpush2.msra.mxu0 0.0
    %2453 = vmatprep.subr.mxu0 0.0
    %2454 = vmatpush2.msra.mxu0 0.0
    %2455 = vmatprep.subr.mxu0 0.0
    %2456 = vmatpush2.msra.mxu0 0.0
    %2457 = vmatprep.subr.mxu0 0.0
    %2458 = vmatpush2.msra.mxu0 0.0
    %2459 = vmatprep.subr.mxu0 0.0
    %2460 = vmatpush2.msra.mxu0 0.0
    %2461 = vmatprep.subr.mxu0 0.0
    %2462 = vmatpush2.msra.mxu0 0.0
    %2463 = vmatprep.mubr.f32.mxu0 0.0
    %2464 = vmatmul.mubr.f32.gmra.mxu0 %v2397
    %v2465 = vpop.f32.mrf.mxu0
    %v2466 = vadd.f32 0.0, %v2465
    %v2467 = vpop.f32.mrf.mxu0
    %2468 = vdwg.mxu0
    %v2470 = vsel %vm2249, %v2248, 0
    %2472 = vmatprep.subr.mxu0 0.0
    %2473 = vmatpush1.msra.mxu0 0.0
    %2474 = vmatprep.subr.mxu0 0.0
    %2475 = vmatpush1.msra.mxu0 0.0
    %2476 = vmatprep.subr.mxu0 0.0
    %2477 = vmatpush1.msra.mxu0 0.0
    %2478 = vmatprep.subr.mxu0 0.0
    %2479 = vmatpush1.msra.mxu0 0.0
    %2480 = vmatprep.subr.mxu0 0.0
    %2481 = vmatpush1.msra.mxu0 0.0
    %2482 = vmatprep.subr.mxu0 0.0
    %2483 = vmatpush1.msra.mxu0 0.0
    %2484 = vmatprep.subr.mxu0 0.0
    %2485 = vmatpush1.msra.mxu0 0.0
    %2486 = vmatprep.subr.mxu0 0.0
    %2487 = vmatpush1.msra.mxu0 0.0
    %2488 = vmatprep.subr.mxu0 0.0
    %2489 = vmatpush1.msra.mxu0 0.0
    %2490 = vmatprep.subr.mxu0 0.0
    %2491 = vmatpush1.msra.mxu0 0.0
    %2492 = vmatprep.subr.mxu0 0.0
    %2493 = vmatpush1.msra.mxu0 0.0
    %2494 = vmatprep.subr.mxu0 0.0
    %2495 = vmatpush1.msra.mxu0 0.0
    %2496 = vmatprep.subr.mxu0 0.0
    %2497 = vmatpush1.msra.mxu0 0.0
    %2498 = vmatprep.subr.mxu0 0.0
    %2499 = vmatpush1.msra.mxu0 %v2006
    %2500 = vmatprep.subr.mxu0 0.0
    %2501 = vmatpush1.msra.mxu0 %v2001
    %2502 = vmatprep.subr.mxu0 0.0
    %2503 = vmatpush1.msra.mxu0 %v1996
    %2504 = vmatprep.subr.mxu0 0.0
    %2505 = vmatpush2.msra.mxu0 0.0
    %2506 = vmatprep.subr.mxu0 0.0
    %2507 = vmatpush2.msra.mxu0 0.0
    %2508 = vmatprep.subr.mxu0 0.0
    %2509 = vmatpush2.msra.mxu0 0.0
    %2510 = vmatprep.subr.mxu0 0.0
    %2511 = vmatpush2.msra.mxu0 0.0
    %2512 = vmatprep.subr.mxu0 0.0
    %2513 = vmatpush2.msra.mxu0 0.0
    %2514 = vmatprep.subr.mxu0 0.0
    %2515 = vmatpush2.msra.mxu0 0.0
    %2516 = vmatprep.subr.mxu0 0.0
    %2517 = vmatpush2.msra.mxu0 0.0
    %2518 = vmatprep.subr.mxu0 0.0
    %2519 = vmatpush2.msra.mxu0 0.0
    %2520 = vmatprep.subr.mxu0 0.0
    %2521 = vmatpush2.msra.mxu0 0.0
    %2522 = vmatprep.subr.mxu0 0.0
    %2523 = vmatpush2.msra.mxu0 0.0
    %2524 = vmatprep.subr.mxu0 0.0
    %2525 = vmatpush2.msra.mxu0 0.0
    %2526 = vmatprep.subr.mxu0 0.0
    %2527 = vmatpush2.msra.mxu0 0.0
    %2528 = vmatprep.subr.mxu0 0.0
    %2529 = vmatpush2.msra.mxu0 0.0
    %2530 = vmatprep.subr.mxu0 0.0
    %2531 = vmatpush2.msra.mxu0 0.0
    %2532 = vmatprep.subr.mxu0 0.0
    %2533 = vmatpush2.msra.mxu0 0.0
    %2534 = vmatprep.subr.mxu0 0.0
    %2535 = vmatpush2.msra.mxu0 0.0
    %2536 = vmatprep.mubr.f32.mxu0 0.0
    %2537 = vmatmul.mubr.f32.gmra.mxu0 %v2470
    %v2538 = vpop.f32.mrf.mxu0
    %v2539 = vadd.f32 0.0, %v2538
    %v2540 = vpop.f32.mrf.mxu0
    %2541 = vdwg.mxu0
    %v2542 = vmax.f32 %v2320, 0.0
    %v2543 = vmax.f32 %v2393, 0.0
    %v2544 = vmax.f32 %v2466, 0.0
    %v2545 = vmax.f32 %v2539, 0.0
    %v2546 = vsel %vm377, %v1838, 0.0
    %v2547 = vsel %vm377, %v1839, 0.0
    %v2548 = vadd.f32 %v2546, %v2547
    %v2549 = vrot.slane %v2548, 4
    %v2550 = vadd.f32 %v2548, %v2549
    %v2551 = vrot.slane %v2550, 2
    %v2552 = vadd.f32 %v2550, %v2551
    %v2553 = vrot.slane %v2552, 1
    %v2554 = vadd.f32 %v2552, %v2553
    %v2555 = vsel %vm377, %v1840, 0.0
    %v2556 = vsel %vm377, %v1841, 0.0
    %v2557 = vadd.f32 %v2555, %v2556
    %v2558 = vrot.slane %v2557, 4
    %v2559 = vadd.f32 %v2557, %v2558
    %v2560 = vrot.slane %v2559, 2
    %v2561 = vadd.f32 %v2559, %v2560
    %v2562 = vrot.slane %v2561, 1
    %v2563 = vadd.f32 %v2561, %v2562
    %v2564 = vsel %vm377, %v1842, 0.0
    %v2565 = vsel %vm377, %v1843, 0.0
    %v2566 = vadd.f32 %v2564, %v2565
    %v2567 = vrot.slane %v2566, 4
    %v2568 = vadd.f32 %v2566, %v2567
    %v2569 = vrot.slane %v2568, 2
    %v2570 = vadd.f32 %v2568, %v2569
    %v2571 = vrot.slane %v2570, 1
    %v2572 = vadd.f32 %v2570, %v2571
    %v2573 = vsel %vm377, %v1844, 0.0
    %v2574 = vsel %vm377, %v1845, 0.0
    %v2575 = vadd.f32 %v2573, %v2574
    %v2576 = vrot.slane %v2575, 4
    %v2577 = vadd.f32 %v2575, %v2576
    %v2578 = vrot.slane %v2577, 2
    %v2579 = vadd.f32 %v2577, %v2578
    %v2580 = vrot.slane %v2579, 1
    %v2581 = vadd.f32 %v2579, %v2580
    %v2582 = vrcp.pop 16.0
    %v2583 = vmul.f32 %v2554, %v2582
    %v2584 = vmul.f32 %v2563, %v2582
    %v2585 = vmul.f32 %v2572, %v2582
    %v2586 = vmul.f32 %v2581, %v2582
    %v2587 = vsel %vm377, %v317, 0.0
    %v2588 = vsel %vm377, %v322, 0.0
    %v2589 = vadd.f32 %v2587, %v2588
    %v2590 = vsel %vm377, %v327, 0.0
    %v2591 = vadd.f32 %v2589, %v2590
    %v2592 = vrot.slane %v2591, 4
    %v2593 = vadd.f32 %v2591, %v2592
    %v2594 = vrot.slane %v2593, 2
    %v2595 = vadd.f32 %v2593, %v2594
    %v2596 = vrot.slane %v2595, 1
    %v2597 = vadd.f32 %v2595, %v2596
    %v2598 = vsel %vm377, %v332, 0.0
    %v2599 = vsel %vm377, %v337, 0.0
    %v2600 = vadd.f32 %v2598, %v2599
    %v2601 = vsel %vm377, %v342, 0.0
    %v2602 = vadd.f32 %v2600, %v2601
    %v2603 = vrot.slane %v2602, 4
    %v2604 = vadd.f32 %v2602, %v2603
    %v2605 = vrot.slane %v2604, 2
    %v2606 = vadd.f32 %v2604, %v2605
    %v2607 = vrot.slane %v2606, 1
    %v2608 = vadd.f32 %v2606, %v2607
    %v2609 = vsel %vm377, %v347, 0.0
    %v2610 = vsel %vm377, %v352, 0.0
    %v2611 = vadd.f32 %v2609, %v2610
    %v2612 = vsel %vm377, %v357, 0.0
    %v2613 = vadd.f32 %v2611, %v2612
    %v2614 = vrot.slane %v2613, 4
    %v2615 = vadd.f32 %v2613, %v2614
    %v2616 = vrot.slane %v2615, 2
    %v2617 = vadd.f32 %v2615, %v2616
    %v2618 = vrot.slane %v2617, 1
    %v2619 = vadd.f32 %v2617, %v2618
    %v2620 = vsel %vm377, %v362, 0.0
    %v2621 = vsel %vm377, %v367, 0.0
    %v2622 = vadd.f32 %v2620, %v2621
    %v2623 = vsel %vm377, %v372, 0.0
    %v2624 = vadd.f32 %v2622, %v2623
    %v2625 = vrot.slane %v2624, 4
    %v2626 = vadd.f32 %v2624, %v2625
    %v2627 = vrot.slane %v2626, 2
    %v2628 = vadd.f32 %v2626, %v2627
    %v2629 = vrot.slane %v2628, 1
    %v2630 = vadd.f32 %v2628, %v2629
    %v2631 = vrcp.pop 24.0
    %v2632 = vmul.f32 %v2597, %v2631
    %v2633 = vmul.f32 %v2608, %v2631
    %v2634 = vmul.f32 %v2619, %v2631
    %v2635 = vmul.f32 %v2630, %v2631
    %v2636 = vsel %vm377, %v2542, 0.0
    %v2637 = vrot.slane %v2636, 4
    %v2638 = vadd.f32 %v2636, %v2637
    %v2639 = vrot.slane %v2638, 2
    %v2640 = vadd.f32 %v2638, %v2639
    %v2641 = vrot.slane %v2640, 1
    %v2642 = vadd.f32 %v2640, %v2641
    %v2643 = vsel %vm377, %v2543, 0.0
    %v2644 = vrot.slane %v2643, 4
    %v2645 = vadd.f32 %v2643, %v2644
    %v2646 = vrot.slane %v2645, 2
    %v2647 = vadd.f32 %v2645, %v2646
    %v2648 = vrot.slane %v2647, 1
    %v2649 = vadd.f32 %v2647, %v2648
    %v2650 = vsel %vm377, %v2544, 0.0
    %v2651 = vrot.slane %v2650, 4
    %v2652 = vadd.f32 %v2650, %v2651
    %v2653 = vrot.slane %v2652, 2
    %v2654 = vadd.f32 %v2652, %v2653
    %v2655 = vrot.slane %v2654, 1
    %v2656 = vadd.f32 %v2654, %v2655
    %v2657 = vsel %vm377, %v2545, 0.0
    %v2658 = vrot.slane %v2657, 4
    %v2659 = vadd.f32 %v2657, %v2658
    %v2660 = vrot.slane %v2659, 2
    %v2661 = vadd.f32 %v2659, %v2660
    %v2662 = vrot.slane %v2661, 1
    %v2663 = vadd.f32 %v2661, %v2662
    %v2664 = vrcp.pop 8.0
    %v2665 = vmul.f32 %v2642, %v2664
    %v2666 = vmul.f32 %v2649, %v2664
    %v2667 = vmul.f32 %v2656, %v2664
    %v2668 = vmul.f32 %v2663, %v2664
    %v2669 = vld [vmem:[#allocation5 + $0x50] sm:$0x1]
    %v2670 = vlaneseq
    %v2671 = vshrl.u32 %v2670, 7
    %v2672 = vsub.s32 0, %v2671
    %v2673 = vrot.slane %v2669, %v2672
    %v2674 = vmul.f32 %v2583, %v2673
    %v2675 = vmul.f32 %v2584, %v2673
    %v2676 = vmul.f32 %v2585, %v2673
    %v2677 = vmul.f32 %v2586, %v2673
    %v2682 = vrot.slane %v2675, 7
    %vm2683 = vcmask 1041409
    %v2684 = vsel %vm2683, %v2682, %v2674
    %v2685 = vrot.slane %v2676, 6
    %vm2686 = vcmask 1042434
    %v2687 = vsel %vm2686, %v2685, %v2684
    %v2688 = vrot.slane %v2677, 5
    %vm2689 = vcmask 1043459
    %v2690 = vsel %vm2689, %v2688, %v2687
    %vm2692 = vcmask 125952
    %v2693 = vsel %vm2692, %v2690, 0.0
    %2694 = vadd.xlane.f32.xlu0 %v2693
    %v2695 = vpop.xlane.xlu0 %2694
    %v2696 = vld [vmem:[#allocation5 + $0x58] sm:$0x1]
    %v2697 = vlaneseq
    %v2698 = vshrl.u32 %v2697, 7
    %v2699 = vsub.s32 0, %v2698
    %v2700 = vrot.slane %v2696, %v2699
    %v2701 = vmul.f32 %v2632, %v2700
    %v2702 = vmul.f32 %v2633, %v2700
    %v2703 = vmul.f32 %v2634, %v2700
    %v2704 = vmul.f32 %v2635, %v2700
    %v2709 = vrot.slane %v2702, 7
    %v2710 = vsel %vm2683, %v2709, %v2701
    %v2711 = vrot.slane %v2703, 6
    %v2712 = vsel %vm2686, %v2711, %v2710
    %v2713 = vrot.slane %v2704, 5
    %v2714 = vsel %vm2689, %v2713, %v2712
    %v2716 = vsel %vm2692, %v2714, 0.0
    %2717 = vadd.xlane.f32.xlu0 %v2716
    %v2718 = vpop.xlane.xlu0 %2717
    %v2719 = vadd.f32 %v2695, %v2718
    %v2720 = vld [vmem:[#allocation5 + $0x60] sm:$0x1]
    %v2721 = vlaneseq
    %v2722 = vshrl.u32 %v2721, 7
    %v2723 = vsub.s32 0, %v2722
    %v2724 = vrot.slane %v2720, %v2723
    %v2725 = vmul.f32 %v2665, %v2724
    %v2726 = vmul.f32 %v2666, %v2724
    %v2727 = vmul.f32 %v2667, %v2724
    %v2728 = vmul.f32 %v2668, %v2724
    %v2733 = vrot.slane %v2726, 7
    %v2734 = vsel %vm2683, %v2733, %v2725
    %v2735 = vrot.slane %v2727, 6
    %v2736 = vsel %vm2686, %v2735, %v2734
    %v2737 = vrot.slane %v2728, 5
    %v2738 = vsel %vm2689, %v2737, %v2736
    %v2740 = vsel %vm2692, %v2738, 0.0
    %2741 = vadd.xlane.f32.xlu0 %v2740
    %v2742 = vpop.xlane.xlu0 %2741
    %v2743 = vadd.f32 %v2719, %v2742
    %v2744 = vld [vmem:[#allocation5 + $0x68] sm:$0x1]
    %v2745 = vlaneseq
    %v2746 = vshrl.u32 %v2745, 7
    %v2747 = vsub.s32 0, %v2746
    %v2748 = vrot.slane %v2744, %v2747
    %v2749 = vadd.f32 %v2743, %v2748
    %vm2750 = vcmask 1043456
    %v2751 = vsel %vm2750, %v2749, 0.0
    %2753 = vset.pattern.permute.xlu0 0
    %2754 = vperm.xlu0 %2753, %v2751
    %v2755 = vpop.permute.xlu0 %2754
    %2757 = vst [vmem:[#allocation7] sm:$0xff] %v2755
    // Predicated region
    $region18: #{tpu_custom_call.1} parent=1 // pred_check
      _
    $region19: #{tpu_custom_call.1} parent=1 // pred_check_branch
      %2759 = sbr.rel (0) target = $region21
    $region20: #{tpu_custom_call.1} parent=1 // pred_region
      %s2761 = ssub.s32 128, 128
      %2762 = vsyncadd [#allocation4], %s2761
      %s2764 = sshll.u32 [#allocation7], 4
      %s2765 = int_to_ptr.vmem [resolvable:$true] %s2764
      %2767 = dma.vmem_to_hbm [thread:$0]  %s2765, 128, %s2, [#allocation4]
    $region21: #{tpu_custom_call.1} parent=1 // pred_fallthru
      _
    // Predicated region
    $region22: #{tpu_custom_call.1} parent=1 // pred_check
      _
    $region23: #{tpu_custom_call.1} parent=1 // pred_check_branch
      %2769 = sbr.rel (0) target = $region25
    $region24: #{tpu_custom_call.1} parent=1 // pred_region
      %2770 = dma.done [#allocation4], 128
    $region25: #{tpu_custom_call.1} parent=1 // pred_fallthru
      _
    %2771 = vsyncpa [#allocation3], 1
    %2772 = vsyncpa [#allocation6], 1
    %2773 = vsyncpa [#allocation4], 1

</llo_original>
